<compile_context>
chip_gen: v5e
topology: v5e:2x2
jax: 0.10.0
libtpu: 0.0.40
codegen_flags: <defaults>
</compile_context>

<pallas_src>
import jax
import jax.numpy as jnp
from jax.experimental import pallas as pl
from jax.experimental.pallas import tpu as pltpu

NEG_SLOPE = 0.2
BN_EPS = 1e-5

# On v6e/v7x, set to jnp.bfloat16 to hit bf16 MXU peak (f32 accumulation is
# kept either way); left at f32 here for bit-faithful parity with PyTorch.
MXU_DTYPE = jnp.float32

VMEM_LIMIT = 32 * 1024 * 1024  # explicit scoped-VMEM budget (safe on v5e/v6e/v7x)


def _leaky(x):
    return jnp.where(x > 0, x, NEG_SLOPE * x)


def _pick_tile(n, target, mult=1):
    """Largest divisor of n that is <= target (and a multiple of `mult`), else n."""
    if n <= target:
        return n
    for d in range(min(n, target), 0, -1):
        if n % d == 0 and d % mult == 0:
            return d
    return n


# ---------------- Pallas kernels ----------------

def conv_stats_kernel(xp_ref, w_ref, b_ref, y_ref, stat_ref):
    """3x3 conv (single fused matmul over the 9 in-kernel taps) + bias.

    Also emits per-tile per-channel sum / sum-of-squares for the global
    BatchNorm statistics (pass 1 of the two-pass BN).
    """
    t = pl.program_id(1)                     # row-tile index within the image
    TH = y_ref.shape[1]
    W = xp_ref.shape[2] - 2
    Cin = xp_ref.shape[3]
    Cout = w_ref.shape[1]

    row0 = t * TH                            # first output row of this tile
    # 9 spatial taps sliced from the VMEM-resident padded image (no HBM im2col).
    taps = [
        xp_ref[0, pl.ds(row0 + dy, TH), pl.ds(dx, W), :]   # (TH, W, Cin)
        for dy in range(3) for dx in range(3)
    ]
    patches = jnp.concatenate(taps, axis=-1).reshape(TH * W, 9 * Cin)

    y = jnp.dot(patches.astype(MXU_DTYPE), w_ref[...].astype(MXU_DTYPE),
                preferred_element_type=jnp.float32)
    y = y + b_ref[...]                       # (TH*W, Cout)

    y_ref[...] = y.reshape(1, TH, W, Cout)

    s = jnp.sum(y, axis=0, keepdims=True)        # (1, Cout)
    sq = jnp.sum(y * y, axis=0, keepdims=True)   # (1, Cout)
    stat_ref[...] = jnp.concatenate([s, sq], axis=0).reshape(1, 1, 2, Cout)


def bn_act_kernel(y_ref, scale_ref, shift_ref, o_ref):
    """Pass 2: apply the folded BatchNorm affine (global stats) + leaky_relu.

    Operates on a lane-dense (rows, P*Cout) packing so stores are unmasked.
    """
    o_ref[...] = _leaky(y_ref[...] * scale_ref[...] + shift_ref[...])


# ---------------- wrapper ----------------

def conv_bn_block_forward(x_nchw, params):
    w, b = params["w"], params["b"]                  # (9*Cin, Cout), (1, Cout)
    gamma, beta = params["gamma"], params["beta"]    # (Cout,), (Cout,)

    N, Cin, H, W = x_nchw.shape
    Cout = w.shape[-1]
    M = N * H * W

    # NCHW -> NHWC, zero-pad spatially (padding=1).
    x = jnp.transpose(x_nchw, (0, 2, 3, 1)).astype(jnp.float32)
    x_pad = jnp.pad(x, ((0, 0), (1, 1), (1, 1), (0, 0)))

    # Row tile: ~1024 flattened output rows per grid step.
    TH = _pick_tile(H, max(1, 1024 // W))
    HT = H // TH

    conv_out, stats = pl.pallas_call(
        conv_stats_kernel,
        out_shape=(
            jax.ShapeDtypeStruct((N, H, W, Cout), jnp.float32),
            jax.ShapeDtypeStruct((N, HT, 2, Cout), jnp.float32),
        ),
        grid_spec=pltpu.PrefetchScalarGridSpec(
            num_scalar_prefetch=0,
            grid=(N, HT),
            in_specs=[
                # whole padded image per n; block index constant over the
                # row-tile axis so it is DMA'd once per image.
                pl.BlockSpec((1, H + 2, W + 2, Cin), lambda n, t: (n, 0, 0, 0)),
                # weights / bias: constant index_map -> resident in VMEM.
                pl.BlockSpec((9 * Cin, Cout), lambda n, t: (0, 0)),
                pl.BlockSpec((1, Cout), lambda n, t: (0, 0)),
            ],
            out_specs=[
                pl.BlockSpec((1, TH, W, Cout), lambda n, t: (n, t, 0, 0)),
                pl.BlockSpec((1, 1, 2, Cout), lambda n, t: (n, t, 0, 0)),
            ],
        ),
        compiler_params=pltpu.CompilerParams(
            dimension_semantics=("parallel", "parallel"),
            vmem_limit_bytes=VMEM_LIMIT,
        ),
    )(x_pad, w, b)

    # ---- fold BatchNorm (global batch statistics) into per-channel scale/shift
    # (tiny per-channel math stays in plain JAX; one-pass E[x^2] - mean^2 form).
    sums = jnp.sum(stats[:, :, 0, :], axis=(0, 1))     # (Cout,)
    sumsq = jnp.sum(stats[:, :, 1, :], axis=(0, 1))    # (Cout,)
    mean = sums / M
    var = jnp.maximum(sumsq / M - mean * mean, 0.0)    # biased variance
    inv = jax.lax.rsqrt(var + BN_EPS)
    scale = gamma * inv
    shift = beta - mean * scale

    # ---- pass 2: lane-dense BN-apply + leaky_relu.
    # Pack P spatial pixels per row so the stored last dim is a multiple of 128.
    P = 1
    if Cout < 128 and 128 % Cout == 0:
        P = 128 // Cout
        while P > 1 and M % P != 0:
            P //= 2
    rows, cols = M // P, P * Cout
    y2 = conv_out.reshape(rows, cols)                  # free reshape (same bytes)
    scale_p = jnp.tile(scale.reshape(1, Cout), (1, P))
    shift_p = jnp.tile(shift.reshape(1, Cout), (1, P))

    TM = _pick_tile(rows, 1024, mult=8)
    out_flat = pl.pallas_call(
        bn_act_kernel,
        out_shape=jax.ShapeDtypeStruct((rows, cols), jnp.float32),
        grid_spec=pltpu.PrefetchScalarGridSpec(
            num_scalar_prefetch=0,
            grid=(rows // TM,),
            in_specs=[
                pl.BlockSpec((TM, cols), lambda i: (i, 0)),
                pl.BlockSpec((1, cols), lambda i: (0, 0)),   # resident
                pl.BlockSpec((1, cols), lambda i: (0, 0)),   # resident
            ],
            out_specs=pl.BlockSpec((TM, cols), lambda i: (i, 0)),
        ),
        compiler_params=pltpu.CompilerParams(
            dimension_semantics=("parallel",),
            vmem_limit_bytes=VMEM_LIMIT,
        ),
    )(y2, scale_p, shift_p)

    out_nhwc = out_flat.reshape(N, H, W, Cout)
    return jnp.transpose(out_nhwc, (0, 3, 1, 2))       # back to NCHW


# ---------------- deterministic parameter init ----------------

def init_conv_bn_params(key, Cin, Cout):
    k1, k2 = jax.random.split(key)
    w = jax.random.normal(k1, (3, 3, Cin, Cout), jnp.float32) * 0.1  # (kh, kw, Cin, Cout)
    b = jax.random.normal(k2, (1, Cout), jnp.float32) * 0.1
    return dict(
        w=w.reshape(9 * Cin, Cout),   # row = (kh*3 + kw)*Cin + ci  (matches kernel tap order)
        b=b,
        gamma=jnp.ones((Cout,), jnp.float32),   # BatchNorm2d weight (default init)
        beta=jnp.zeros((Cout,), jnp.float32),   # BatchNorm2d bias
    )


# ---------------- pure-JAX reference (for a correctness sanity check) ----------------

def _reference_forward(x_nchw, params):
    Cin = x_nchw.shape[1]
    Cout = params["w"].shape[-1]
    w = params["w"].reshape(3, 3, Cin, Cout)           # HWIO
    y = jax.lax.conv_general_dilated(
        x_nchw, w, window_strides=(1, 1), padding=((1, 1), (1, 1)),
        dimension_numbers=("NCHW", "HWIO", "NCHW"),
        precision=jax.lax.Precision.HIGHEST)
    y = y + params["b"].reshape(1, Cout, 1, 1)
    mean = jnp.mean(y, axis=(0, 2, 3), keepdims=True)
    var = jnp.mean((y - mean) ** 2, axis=(0, 2, 3), keepdims=True)
    yn = (y - mean) * jax.lax.rsqrt(var + BN_EPS)
    yn = yn * params["gamma"].reshape(1, Cout, 1, 1) + params["beta"].reshape(1, Cout, 1, 1)
    return jnp.where(yn > 0, yn, NEG_SLOPE * yn)


if __name__ == "__main__":
    key = jax.random.PRNGKey(0)
    kx, kp = jax.random.split(key)

    # Conv_bn_block(in_channels=4, out_channels=32, kernel_size=3, padding=1)
    N, Cin, H, W = 2, 4, 16, 16
    Cout = 32
    x = jax.random.normal(kx, (N, Cin, H, W), jnp.float32)
    params = init_conv_bn_params(kp, Cin, Cout)

    fwd = jax.jit(conv_bn_block_forward)
    out = fwd(x, params)
    jax.block_until_ready(out)

    assert out.shape == (N, Cout, H, W)
    assert jnp.all(jnp.isfinite(out))

    ref = _reference_forward(x, params)
    max_err = float(jnp.max(jnp.abs(out - ref)))
    assert jnp.allclose(out, ref, atol=2e-2, rtol=2e-2), f"max_abs_err={max_err}"

    print("KERNEL_OK")
</pallas_src>

<mosaic_0001>
module attributes {stable_mosaic.version = 11 : i64} {
  func.func @conv_stats_kernel(%arg0: i32, %arg1: i32, %arg2: memref<1x18x18x4xf32, #tpu.memory_space<vmem>>, %arg3: memref<36x32xf32, #tpu.memory_space<vmem>>, %arg4: memref<1x32xf32, #tpu.memory_space<vmem>>, %arg5: memref<1x16x16x32xf32, #tpu.memory_space<vmem>>, %arg6: memref<1x1x2x32xf32, #tpu.memory_space<vmem>>) attributes {dimension_semantics = [#tpu.dimension_semantics<parallel>, #tpu.dimension_semantics<parallel>], iteration_bounds = array<i64: 2, 1>, scalar_prefetch = 0 : i64, scratch_operands = 0 : i64, tpu.core_type = #tpu.core_type<tc>, window_params = [{transform_indices = @transform_0, window_bounds = array<i64: 1, 18, 18, 4>}, {pipeline_mode = #tpu.pipeline_mode<synchronous>, transform_indices = @transform_1, window_bounds = array<i64: 36, 32>}, {pipeline_mode = #tpu.pipeline_mode<synchronous>, transform_indices = @transform_2, window_bounds = array<i64: 1, 32>}, {transform_indices = @transform_3, window_bounds = array<i64: 1, 16, 16, 32>}, {transform_indices = @transform_4, window_bounds = array<i64: 1, 1, 2, 32>}]} {
    %c16_i32 = arith.constant 16 : i32
    %0 = arith.muli %arg1, %c16_i32 : i32
    %c0_i32 = arith.constant 0 : i32
    %1 = arith.addi %0, %c0_i32 : i32
    %c0 = arith.constant 0 : index
    %2 = arith.index_cast %1 : i32 to index
    %c0_0 = arith.constant 0 : index
    %c0_1 = arith.constant 0 : index
    %3 = vector.load %arg2[%c0, %2, %c0_0, %c0_1] : memref<1x18x18x4xf32, #tpu.memory_space<vmem>>, vector<1x16x16x4xf32>
    %4 = vector.shape_cast %3 : vector<1x16x16x4xf32> to vector<16x16x4xf32>
    %c0_i32_2 = arith.constant 0 : i32
    %5 = arith.addi %0, %c0_i32_2 : i32
    %c0_3 = arith.constant 0 : index
    %6 = arith.index_cast %5 : i32 to index
    %c1 = arith.constant 1 : index
    %c0_4 = arith.constant 0 : index
    %7 = vector.load %arg2[%c0_3, %6, %c1, %c0_4] : memref<1x18x18x4xf32, #tpu.memory_space<vmem>>, vector<1x16x16x4xf32>
    %8 = vector.shape_cast %7 : vector<1x16x16x4xf32> to vector<16x16x4xf32>
    %c0_i32_5 = arith.constant 0 : i32
    %9 = arith.addi %0, %c0_i32_5 : i32
    %c0_6 = arith.constant 0 : index
    %10 = arith.index_cast %9 : i32 to index
    %c2 = arith.constant 2 : index
    %c0_7 = arith.constant 0 : index
    %11 = vector.load %arg2[%c0_6, %10, %c2, %c0_7] : memref<1x18x18x4xf32, #tpu.memory_space<vmem>>, vector<1x16x16x4xf32>
    %12 = vector.shape_cast %11 : vector<1x16x16x4xf32> to vector<16x16x4xf32>
    %c1_i32 = arith.constant 1 : i32
    %13 = arith.addi %0, %c1_i32 : i32
    %c0_8 = arith.constant 0 : index
    %14 = arith.index_cast %13 : i32 to index
    %c0_9 = arith.constant 0 : index
    %c0_10 = arith.constant 0 : index
    %15 = vector.load %arg2[%c0_8, %14, %c0_9, %c0_10] : memref<1x18x18x4xf32, #tpu.memory_space<vmem>>, vector<1x16x16x4xf32>
    %16 = vector.shape_cast %15 : vector<1x16x16x4xf32> to vector<16x16x4xf32>
    %c1_i32_11 = arith.constant 1 : i32
    %17 = arith.addi %0, %c1_i32_11 : i32
    %c0_12 = arith.constant 0 : index
    %18 = arith.index_cast %17 : i32 to index
    %c1_13 = arith.constant 1 : index
    %c0_14 = arith.constant 0 : index
    %19 = vector.load %arg2[%c0_12, %18, %c1_13, %c0_14] : memref<1x18x18x4xf32, #tpu.memory_space<vmem>>, vector<1x16x16x4xf32>
    %20 = vector.shape_cast %19 : vector<1x16x16x4xf32> to vector<16x16x4xf32>
    %c1_i32_15 = arith.constant 1 : i32
    %21 = arith.addi %0, %c1_i32_15 : i32
    %c0_16 = arith.constant 0 : index
    %22 = arith.index_cast %21 : i32 to index
    %c2_17 = arith.constant 2 : index
    %c0_18 = arith.constant 0 : index
    %23 = vector.load %arg2[%c0_16, %22, %c2_17, %c0_18] : memref<1x18x18x4xf32, #tpu.memory_space<vmem>>, vector<1x16x16x4xf32>
    %24 = vector.shape_cast %23 : vector<1x16x16x4xf32> to vector<16x16x4xf32>
    %c2_i32 = arith.constant 2 : i32
    %25 = arith.addi %0, %c2_i32 : i32
    %c0_19 = arith.constant 0 : index
    %26 = arith.index_cast %25 : i32 to index
    %c0_20 = arith.constant 0 : index
    %c0_21 = arith.constant 0 : index
    %27 = vector.load %arg2[%c0_19, %26, %c0_20, %c0_21] : memref<1x18x18x4xf32, #tpu.memory_space<vmem>>, vector<1x16x16x4xf32>
    %28 = vector.shape_cast %27 : vector<1x16x16x4xf32> to vector<16x16x4xf32>
    %c2_i32_22 = arith.constant 2 : i32
    %29 = arith.addi %0, %c2_i32_22 : i32
    %c0_23 = arith.constant 0 : index
    %30 = arith.index_cast %29 : i32 to index
    %c1_24 = arith.constant 1 : index
    %c0_25 = arith.constant 0 : index
    %31 = vector.load %arg2[%c0_23, %30, %c1_24, %c0_25] : memref<1x18x18x4xf32, #tpu.memory_space<vmem>>, vector<1x16x16x4xf32>
    %32 = vector.shape_cast %31 : vector<1x16x16x4xf32> to vector<16x16x4xf32>
    %c2_i32_26 = arith.constant 2 : i32
    %33 = arith.addi %0, %c2_i32_26 : i32
    %c0_27 = arith.constant 0 : index
    %34 = arith.index_cast %33 : i32 to index
    %c2_28 = arith.constant 2 : index
    %c0_29 = arith.constant 0 : index
    %35 = vector.load %arg2[%c0_27, %34, %c2_28, %c0_29] : memref<1x18x18x4xf32, #tpu.memory_space<vmem>>, vector<1x16x16x4xf32>
    %36 = vector.shape_cast %35 : vector<1x16x16x4xf32> to vector<16x16x4xf32>
    %37 = tpu.concatenate %4, %8, %12, %16, %20, %24, %28, %32, %36 in 2 : vector<16x16x4xf32>, vector<16x16x4xf32>, vector<16x16x4xf32>, vector<16x16x4xf32>, vector<16x16x4xf32>, vector<16x16x4xf32>, vector<16x16x4xf32>, vector<16x16x4xf32>, vector<16x16x4xf32> -> vector<16x16x36xf32>
    %38 = vector.shape_cast %37 : vector<16x16x36xf32> to vector<256x36xf32>
    %c0_30 = arith.constant 0 : index
    %c0_31 = arith.constant 0 : index
    %39 = vector.load %arg3[%c0_30, %c0_31] : memref<36x32xf32, #tpu.memory_space<vmem>>, vector<36x32xf32>
    %cst = arith.constant dense<0.000000e+00> : vector<256x32xf32>
    %40 = tpu.matmul %38, %39, %cst {dimension_numbers = #tpu.dot_dimension_numbers<[1], [0], [0], [1], [0, 0, 1, 1], [], []>} : vector<256x36xf32>, vector<36x32xf32>, vector<256x32xf32> -> vector<256x32xf32>
    %c0_32 = arith.constant 0 : index
    %c0_33 = arith.constant 0 : index
    %41 = vector.load %arg4[%c0_32, %c0_33] : memref<1x32xf32, #tpu.memory_space<vmem>>, vector<1x32xf32>
    %42 = vector.broadcast %41 : vector<1x32xf32> to vector<256x32xf32>
    %43 = arith.addf %40, %42 : vector<256x32xf32>
    %44 = vector.shape_cast %43 : vector<256x32xf32> to vector<1x16x16x32xf32>
    %c0_34 = arith.constant 0 : index
    %c0_35 = arith.constant 0 : index
    %c0_36 = arith.constant 0 : index
    %c0_37 = arith.constant 0 : index
    %45 = vector.load %arg5[%c0_34, %c0_35, %c0_36, %c0_37] : memref<1x16x16x32xf32, #tpu.memory_space<vmem>>, vector<1x16x16x32xf32>
    tpu.vector_store %arg5[%c0_34, %c0_35, %c0_36, %c0_37], %44 {strides = array<i32>} : memref<1x16x16x32xf32, #tpu.memory_space<vmem>>, vector<1x16x16x32xf32>,
    %cst_38 = arith.constant dense<0.000000e+00> : vector<32xf32>
    %46 = vector.multi_reduction <add>, %43, %cst_38 [0] : vector<256x32xf32> to vector<32xf32>
    %47 = vector.shape_cast %46 : vector<32xf32> to vector<1x32xf32>
    %48 = arith.mulf %43, %43 : vector<256x32xf32>
    %cst_39 = arith.constant dense<0.000000e+00> : vector<32xf32>
    %49 = vector.multi_reduction <add>, %48, %cst_39 [0] : vector<256x32xf32> to vector<32xf32>
    %50 = vector.shape_cast %49 : vector<32xf32> to vector<1x32xf32>
    %51 = tpu.concatenate %47, %50 in 0 : vector<1x32xf32>, vector<1x32xf32> -> vector<2x32xf32>
    %52 = vector.shape_cast %51 : vector<2x32xf32> to vector<1x1x2x32xf32>
    %c0_40 = arith.constant 0 : index
    %c0_41 = arith.constant 0 : index
    %c0_42 = arith.constant 0 : index
    %c0_43 = arith.constant 0 : index
    %53 = vector.load %arg6[%c0_40, %c0_41, %c0_42, %c0_43] : memref<1x1x2x32xf32, #tpu.memory_space<vmem>>, vector<1x1x2x32xf32>
    tpu.vector_store %arg6[%c0_40, %c0_41, %c0_42, %c0_43], %52 {strides = array<i32>} : memref<1x1x2x32xf32, #tpu.memory_space<vmem>>, vector<1x1x2x32xf32>,
    return
  }
  func.func @transform_0(%arg0: i32, %arg1: i32) -> (i32, i32, i32, i32) {
    %c0_i32 = arith.constant 0 : i32
    %c0_i32_0 = arith.constant 0 : i32
    %c0_i32_1 = arith.constant 0 : i32
    %c0_i32_2 = arith.constant 0 : i32
    return %arg0, %c0_i32, %c0_i32_0, %c0_i32_1 : i32, i32, i32, i32
  }
  func.func @transform_1(%arg0: i32, %arg1: i32) -> (i32, i32) {
    %c0_i32 = arith.constant 0 : i32
    %c0_i32_0 = arith.constant 0 : i32
    %c0_i32_1 = arith.constant 0 : i32
    return %c0_i32, %c0_i32_0 : i32, i32
  }
  func.func @transform_2(%arg0: i32, %arg1: i32) -> (i32, i32) {
    %c0_i32 = arith.constant 0 : i32
    %c0_i32_0 = arith.constant 0 : i32
    %c0_i32_1 = arith.constant 0 : i32
    return %c0_i32, %c0_i32_0 : i32, i32
  }
  func.func @transform_3(%arg0: i32, %arg1: i32) -> (i32, i32, i32, i32) {
    %c0_i32 = arith.constant 0 : i32
    %c0_i32_0 = arith.constant 0 : i32
    %c0_i32_1 = arith.constant 0 : i32
    return %arg0, %arg1, %c0_i32, %c0_i32_0 : i32, i32, i32, i32
  }
  func.func @transform_4(%arg0: i32, %arg1: i32) -> (i32, i32, i32, i32) {
    %c0_i32 = arith.constant 0 : i32
    %c0_i32_0 = arith.constant 0 : i32
    %c0_i32_1 = arith.constant 0 : i32
    return %arg0, %arg1, %c0_i32, %c0_i32_0 : i32, i32, i32, i32
  }
}

module attributes {stable_mosaic.version = 11 : i64} {
  func.func @bn_act_kernel(%arg0: i32, %arg1: memref<128x128xf32, #tpu.memory_space<vmem>>, %arg2: memref<1x128xf32, #tpu.memory_space<vmem>>, %arg3: memref<1x128xf32, #tpu.memory_space<vmem>>, %arg4: memref<128x128xf32, #tpu.memory_space<vmem>>) attributes {dimension_semantics = [#tpu.dimension_semantics<parallel>], iteration_bounds = array<i64: 1>, scalar_prefetch = 0 : i64, scratch_operands = 0 : i64, tpu.core_type = #tpu.core_type<tc>, window_params = [{transform_indices = @transform_0, window_bounds = array<i64: 128, 128>}, {pipeline_mode = #tpu.pipeline_mode<synchronous>, transform_indices = @transform_1, window_bounds = array<i64: 1, 128>}, {pipeline_mode = #tpu.pipeline_mode<synchronous>, transform_indices = @transform_2, window_bounds = array<i64: 1, 128>}, {transform_indices = @transform_3, window_bounds = array<i64: 128, 128>}]} {
    %c0 = arith.constant 0 : index
    %c0_0 = arith.constant 0 : index
    %0 = vector.load %arg1[%c0, %c0_0] : memref<128x128xf32, #tpu.memory_space<vmem>>, vector<128x128xf32>
    %c0_1 = arith.constant 0 : index
    %c0_2 = arith.constant 0 : index
    %1 = vector.load %arg2[%c0_1, %c0_2] : memref<1x128xf32, #tpu.memory_space<vmem>>, vector<1x128xf32>
    %2 = vector.broadcast %1 : vector<1x128xf32> to vector<128x128xf32>
    %3 = arith.mulf %0, %2 : vector<128x128xf32>
    %c0_3 = arith.constant 0 : index
    %c0_4 = arith.constant 0 : index
    %4 = vector.load %arg3[%c0_3, %c0_4] : memref<1x128xf32, #tpu.memory_space<vmem>>, vector<1x128xf32>
    %5 = vector.broadcast %4 : vector<1x128xf32> to vector<128x128xf32>
    %6 = arith.addf %3, %5 : vector<128x128xf32>
    %cst = arith.constant 0.000000e+00 : f32
    %7 = vector.broadcast %cst : f32 to vector<128x128xf32>
    %8 = arith.cmpf ogt, %6, %7 : vector<128x128xf32>
    %cst_5 = arith.constant 2.000000e-01 : f32
    %9 = vector.broadcast %cst_5 : f32 to vector<128x128xf32>
    %10 = arith.mulf %9, %6 : vector<128x128xf32>
    %11 = arith.select %8, %6, %10 : vector<128x128xi1>, vector<128x128xf32>
    %c0_6 = arith.constant 0 : index
    %c0_7 = arith.constant 0 : index
    %12 = vector.load %arg4[%c0_6, %c0_7] : memref<128x128xf32, #tpu.memory_space<vmem>>, vector<128x128xf32>
    tpu.vector_store %arg4[%c0_6, %c0_7], %11 {strides = array<i32>} : memref<128x128xf32, #tpu.memory_space<vmem>>, vector<128x128xf32>,
    return
  }
  func.func @transform_0(%arg0: i32) -> (i32, i32) {
    %c0_i32 = arith.constant 0 : i32
    %c0_i32_0 = arith.constant 0 : i32
    return %arg0, %c0_i32 : i32, i32
  }
  func.func @transform_1(%arg0: i32) -> (i32, i32) {
    %c0_i32 = arith.constant 0 : i32
    %c0_i32_0 = arith.constant 0 : i32
    %c0_i32_1 = arith.constant 0 : i32
    return %c0_i32, %c0_i32_0 : i32, i32
  }
  func.func @transform_2(%arg0: i32) -> (i32, i32) {
    %c0_i32 = arith.constant 0 : i32
    %c0_i32_0 = arith.constant 0 : i32
    %c0_i32_1 = arith.constant 0 : i32
    return %c0_i32, %c0_i32_0 : i32, i32
  }
  func.func @transform_3(%arg0: i32) -> (i32, i32) {
    %c0_i32 = arith.constant 0 : i32
    %c0_i32_0 = arith.constant 0 : i32
    return %arg0, %c0_i32 : i32, i32
  }
}

</mosaic_0001>

<llo_original>
// kernel: conv_bn_block_forward.3
$region0: #{conv_bn_block_forward.3}
  #allocation0 [shape = 'u32[]', space=smem, size = 0x4, offset = 0x4, fixed_abs, tag = 'smem constant byte address 0x4 - core index']
  #allocation1 [shape = 'u32[72,128]{1,0:T(1,128)}', space=vmem, size = 0x9000, scoped, tag = 'internal scratch']
  %s0 = inlined_call_operand.vmem [shape: f32[128,128], index: 0, kind: input, shape index: {}]
  %s1 = inlined_call_operand.vmem [shape: f32[1,128], index: 1, kind: input, shape index: {}]
  %s2 = inlined_call_operand.vmem [shape: f32[1,128], index: 2, kind: input, shape index: {}]
  %s3 = inlined_call_operand.vmem [shape: f32[128,128], index: 3, kind: output, shape index: {}]
  %s4 = sld [smem:[#allocation0]]
  $region22: #{conv_bn_block_forward.3} parent=0
    _
  %s6 = ssub.s32 1, %s4
  %s7 = scalar_select 0, %s6, %s4
  // Predicated region
  $region2: #{conv_bn_block_forward.3} parent=0 // pred_check
    _
  $region3: #{conv_bn_block_forward.3} parent=0 // pred_check_branch
    %9 = sbr.rel (0) target = $region5
  $region4: #{conv_bn_block_forward.3} parent=0 // pred_region
    _
  $region5: #{conv_bn_block_forward.3} parent=0 // pred_fallthru
    _
  // Predicated region
  $region6: #{conv_bn_block_forward.3} parent=0 // pred_check
    _
  $region7: #{conv_bn_block_forward.3} parent=0 // pred_check_branch
    %11 = sbr.rel (0) target = $region9
  $region8: #{conv_bn_block_forward.3} parent=0 // pred_region
    _
  $region9: #{conv_bn_block_forward.3} parent=0 // pred_fallthru
    _
  // Predicated region
  $region10: #{conv_bn_block_forward.3} parent=0 // pred_check
    _
  $region11: #{conv_bn_block_forward.3} parent=0 // pred_check_branch
    %13 = sbr.rel (0) target = $region13
  $region12: #{conv_bn_block_forward.3} parent=0 // pred_region
    _
  $region13: #{conv_bn_block_forward.3} parent=0 // pred_fallthru
    _
  %v14 = vld [vmem:[%s0] sm:$0xff]
  %v15 = vld [vmem:[%s0 + $0x8] sm:$0xff]
  %v16 = vld [vmem:[%s0 + $0x10] sm:$0xff]
  %v17 = vld [vmem:[%s0 + $0x18] sm:$0xff]
  %v18 = vld [vmem:[%s0 + $0x20] sm:$0xff]
  %v19 = vld [vmem:[%s0 + $0x28] sm:$0xff]
  %v20 = vld [vmem:[%s0 + $0x30] sm:$0xff]
  %v21 = vld [vmem:[%s0 + $0x38] sm:$0xff]
  %v22 = vld [vmem:[%s0 + $0x40] sm:$0xff]
  %v23 = vld [vmem:[%s0 + $0x48] sm:$0xff]
  %v24 = vld [vmem:[%s0 + $0x50] sm:$0xff]
  %v25 = vld [vmem:[%s0 + $0x58] sm:$0xff]
  %v26 = vld [vmem:[%s0 + $0x60] sm:$0xff]
  %v27 = vld [vmem:[%s0 + $0x68] sm:$0xff]
  %v28 = vld [vmem:[%s0 + $0x70] sm:$0xff]
  %v29 = vld [vmem:[%s0 + $0x78] sm:$0xff]
  %v30 = vld [vmem:[%s1] sm:$0x1]
  %v32 = vperm.slane %v30, 0
  %v34 = vmul.f32 %v14, %v32
  %v35 = vmul.f32 %v15, %v32
  %v36 = vmul.f32 %v16, %v32
  %v37 = vmul.f32 %v17, %v32
  %v38 = vmul.f32 %v18, %v32
  %v39 = vmul.f32 %v19, %v32
  %v40 = vmul.f32 %v20, %v32
  %v41 = vmul.f32 %v21, %v32
  %v42 = vmul.f32 %v22, %v32
  %v43 = vmul.f32 %v23, %v32
  %v44 = vmul.f32 %v24, %v32
  %v45 = vmul.f32 %v25, %v32
  %v46 = vmul.f32 %v26, %v32
  %v47 = vmul.f32 %v27, %v32
  %v48 = vmul.f32 %v28, %v32
  %v49 = vmul.f32 %v29, %v32
  %v50 = vld [vmem:[%s2] sm:$0x1]
  %v52 = vperm.slane %v50, 0
  %v54 = vadd.f32 %v34, %v52
  %v55 = vadd.f32 %v35, %v52
  %v56 = vadd.f32 %v36, %v52
  %v57 = vadd.f32 %v37, %v52
  %v58 = vadd.f32 %v38, %v52
  %v59 = vadd.f32 %v39, %v52
  %v60 = vadd.f32 %v40, %v52
  %v61 = vadd.f32 %v41, %v52
  %v62 = vadd.f32 %v42, %v52
  %v63 = vadd.f32 %v43, %v52
  %v64 = vadd.f32 %v44, %v52
  %v65 = vadd.f32 %v45, %v52
  %v66 = vadd.f32 %v46, %v52
  %v67 = vadd.f32 %v47, %v52
  %v68 = vadd.f32 %v48, %v52
  %v69 = vadd.f32 %v49, %v52
  %vm70 = vcmp.gt.f32.partialorder %v54, 0.0
  %vm71 = vcmp.gt.f32.partialorder %v55, 0.0
  %vm72 = vcmp.gt.f32.partialorder %v56, 0.0
  %vm73 = vcmp.gt.f32.partialorder %v57, 0.0
  %vm74 = vcmp.gt.f32.partialorder %v58, 0.0
  %vm75 = vcmp.gt.f32.partialorder %v59, 0.0
  %vm76 = vcmp.gt.f32.partialorder %v60, 0.0
  %vm77 = vcmp.gt.f32.partialorder %v61, 0.0
  %vm78 = vcmp.gt.f32.partialorder %v62, 0.0
  %vm79 = vcmp.gt.f32.partialorder %v63, 0.0
  %vm80 = vcmp.gt.f32.partialorder %v64, 0.0
  %vm81 = vcmp.gt.f32.partialorder %v65, 0.0
  %vm82 = vcmp.gt.f32.partialorder %v66, 0.0
  %vm83 = vcmp.gt.f32.partialorder %v67, 0.0
  %vm84 = vcmp.gt.f32.partialorder %v68, 0.0
  %vm85 = vcmp.gt.f32.partialorder %v69, 0.0
  %v86 = vmul.f32 %v54, 0.2
  %v87 = vmul.f32 %v55, 0.2
  %v88 = vmul.f32 %v56, 0.2
  %v89 = vmul.f32 %v57, 0.2
  %v90 = vmul.f32 %v58, 0.2
  %v91 = vmul.f32 %v59, 0.2
  %v92 = vmul.f32 %v60, 0.2
  %v93 = vmul.f32 %v61, 0.2
  %v94 = vmul.f32 %v62, 0.2
  %v95 = vmul.f32 %v63, 0.2
  %v96 = vmul.f32 %v64, 0.2
  %v97 = vmul.f32 %v65, 0.2
  %v98 = vmul.f32 %v66, 0.2
  %v99 = vmul.f32 %v67, 0.2
  %v100 = vmul.f32 %v68, 0.2
  %v101 = vmul.f32 %v69, 0.2
  %v102 = vsel %vm70, %v54, %v86
  %v103 = vsel %vm71, %v55, %v87
  %v104 = vsel %vm72, %v56, %v88
  %v105 = vsel %vm73, %v57, %v89
  %v106 = vsel %vm74, %v58, %v90
  %v107 = vsel %vm75, %v59, %v91
  %v108 = vsel %vm76, %v60, %v92
  %v109 = vsel %vm77, %v61, %v93
  %v110 = vsel %vm78, %v62, %v94
  %v111 = vsel %vm79, %v63, %v95
  %v112 = vsel %vm80, %v64, %v96
  %v113 = vsel %vm81, %v65, %v97
  %v114 = vsel %vm82, %v66, %v98
  %v115 = vsel %vm83, %v67, %v99
  %v116 = vsel %vm84, %v68, %v100
  %v117 = vsel %vm85, %v69, %v101
  %118 = vst [vmem:[%s3] sm:$0xff] %v102
  %119 = vst [vmem:[%s3 + $0x8] sm:$0xff] %v103
  %120 = vst [vmem:[%s3 + $0x10] sm:$0xff] %v104
  %121 = vst [vmem:[%s3 + $0x18] sm:$0xff] %v105
  %122 = vst [vmem:[%s3 + $0x20] sm:$0xff] %v106
  %123 = vst [vmem:[%s3 + $0x28] sm:$0xff] %v107
  %124 = vst [vmem:[%s3 + $0x30] sm:$0xff] %v108
  %125 = vst [vmem:[%s3 + $0x38] sm:$0xff] %v109
  %126 = vst [vmem:[%s3 + $0x40] sm:$0xff] %v110
  %127 = vst [vmem:[%s3 + $0x48] sm:$0xff] %v111
  %128 = vst [vmem:[%s3 + $0x50] sm:$0xff] %v112
  %129 = vst [vmem:[%s3 + $0x58] sm:$0xff] %v113
  %130 = vst [vmem:[%s3 + $0x60] sm:$0xff] %v114
  %131 = vst [vmem:[%s3 + $0x68] sm:$0xff] %v115
  %132 = vst [vmem:[%s3 + $0x70] sm:$0xff] %v116
  %133 = vst [vmem:[%s3 + $0x78] sm:$0xff] %v117
  // Predicated region
  $region14: #{conv_bn_block_forward.3} parent=0 // pred_check
    _
  $region15: #{conv_bn_block_forward.3} parent=0 // pred_check_branch
    %135 = sbr.rel (0) target = $region17
  $region16: #{conv_bn_block_forward.3} parent=0 // pred_region
    _
  $region17: #{conv_bn_block_forward.3} parent=0 // pred_fallthru
    _
  // Predicated region
  $region18: #{conv_bn_block_forward.3} parent=0 // pred_check
    _
  $region19: #{conv_bn_block_forward.3} parent=0 // pred_check_branch
    %137 = sbr.rel (0) target = $region21
  $region20: #{conv_bn_block_forward.3} parent=0 // pred_region
    _
  $region21: #{conv_bn_block_forward.3} parent=0 // pred_fallthru
    _

// kernel: conv_bn_block_forward.2
$region0: #{conv_bn_block_forward.2}
  #allocation0 [shape = 'u32[]', space=smem, size = 0x4, offset = 0x4, fixed_abs, tag = 'smem constant byte address 0x4 - core index']
  #allocation1 [shape = 'u32[72,128]{1,0:T(1,128)}', space=vmem, size = 0x9000, scoped, tag = 'internal scratch']
  %s0 = inlined_call_operand.vmem [shape: f32[2,18,18,4], index: 0, kind: input, shape index: {}]
  %s1 = inlined_call_operand.vmem [shape: f32[36,32], index: 1, kind: input, shape index: {}]
  %s2 = inlined_call_operand.vmem [shape: f32[1,32], index: 2, kind: input, shape index: {}]
  %s3 = inlined_call_operand.vmem [shape: f32[2,16,16,32], index: 3, kind: output, shape index: {0}]
  %s4 = inlined_call_operand.vmem [shape: f32[2,1,2,32], index: 4, kind: output, shape index: {1}]
  %5 = xla_tuple %s3, %s4
  %s6 = sld [smem:[#allocation0]]
  $region53: #{conv_bn_block_forward.2} parent=0
    _
  %s8 = ssub.s32 1, %s6
  %s9 = scalar_select 0, %s8, %s6
  loop: start=0, step=1, limit=4
  $region2: #{conv_bn_block_forward.2} parent=0 // loop_pre_header
    _
  $region3: #{conv_bn_block_forward.2} parent=0 // loop_header
    %s11 = sphi 0, %s15
    %p12 = scmp.ge.s32.totalorder %s11, 4
    %s18 = sphi 0, %s30
    %s19 = sphi 0, %s26
    %s20 = sphi 0, %s18
    %s21 = sphi 0, %s19
    %s22 = sphi 0, %s20
    %s23 = sphi 0, %s21
    %s33 = sphi 0, %s35
    %s36 = sphi 0, %s33
    %s37 = sphi 0, %s36
    %s53 = sphi 0, %s37
    %s57 = sphi 0, %s57
    %s59 = sphi 0, %s57
    %s60 = sphi 0, %s59
    %s74 = sphi 0, %s60
    %s78 = sphi 0, %s78
    %s80 = sphi 0, %s78
    %s81 = sphi 0, %s80
    %s95 = sphi 0, %s81
    %s103 = sphi 0, %s105
    %s106 = sphi 0, %s103
    %s107 = sphi 0, %s106
    %s123 = sphi 0, %s107
    %s131 = sphi 0, %s133
    %s134 = sphi 0, %s131
    %s135 = sphi 0, %s134
    %s151 = sphi 0, %s135
  $region4: #{conv_bn_block_forward.2} parent=0 // loop_header_branch
    %14 = sbr.rel (%p12) target = $region8
  $region5: #{conv_bn_block_forward.2} parent=0 // loop_body
    %s16 = ssub.s32 %s11, 1
    %s17 = ssub.s32 %s11, 2
    %s24 = sadd.s32 1, %s19
    %p25 = scmp.ge.s32.totalorder %s24, 1
    %s26 = scalar_select %p25, 0, %s24
    %s27 = sadd.s32 1, %s18
    %s28 = scalar_select %p25, %s27, %s18
    %p29 = scmp.ge.s32.totalorder %s28, 2
    %s30 = scalar_select %p29, 0, %s28
    %s31 = ssub.s32 %s18, %s30
    %p32 = scmp.eq.s32.totalorder %s31, 0
    %s34 = sadd.s32 %s33, 1
    %s35 = scalar_select %p32, %s33, %s34
    %p38 = pneg %p32
    %p39 = scmp.eq.s32.totalorder %s11, 1
    %p40 = por %p38, %p39
    %p41 = scmp.ne.s32.totalorder %s33, %s36
    %p42 = scmp.eq.s32.totalorder %s11, 0
    %p43 = por %p41, %p42
    %p44 = scmp.ne.s32.totalorder %s33, %s36
    %p45 = scmp.eq.s32.totalorder %s16, 1
    %p46 = por %p44, %p45
    %p47 = scmp.ne.s32.totalorder %s36, %s37
    %p48 = scmp.eq.s32.totalorder %s16, 0
    %p49 = por %p47, %p48
    %p50 = scmp.ne.s32.totalorder %s36, %s37
    %p51 = scmp.eq.s32.totalorder %s17, 1
    %p52 = por %p50, %p51
    %p54 = scmp.ne.s32.totalorder %s37, %s53
    %p55 = scmp.eq.s32.totalorder %s17, 0
    %p56 = por %p54, %p55
    %s58 = sadd.s32 %s57, 1
    %p61 = scmp.eq.s32.totalorder %s11, 1
    %p62 = scmp.ne.s32.totalorder %s57, %s59
    %p63 = scmp.eq.s32.totalorder %s11, 0
    %p64 = por %p62, %p63
    %p65 = scmp.ne.s32.totalorder %s57, %s59
    %p66 = scmp.eq.s32.totalorder %s16, 1
    %p67 = por %p65, %p66
    %p68 = scmp.ne.s32.totalorder %s59, %s60
    %p69 = scmp.eq.s32.totalorder %s16, 0
    %p70 = por %p68, %p69
    %p71 = scmp.ne.s32.totalorder %s59, %s60
    %p72 = scmp.eq.s32.totalorder %s17, 1
    %p73 = por %p71, %p72
    %p75 = scmp.ne.s32.totalorder %s60, %s74
    %p76 = scmp.eq.s32.totalorder %s17, 0
    %p77 = por %p75, %p76
    %s79 = sadd.s32 %s78, 1
    %p82 = scmp.eq.s32.totalorder %s11, 1
    %p83 = scmp.ne.s32.totalorder %s78, %s80
    %p84 = scmp.eq.s32.totalorder %s11, 0
    %p85 = por %p83, %p84
    %p86 = scmp.ne.s32.totalorder %s78, %s80
    %p87 = scmp.eq.s32.totalorder %s16, 1
    %p88 = por %p86, %p87
    %p89 = scmp.ne.s32.totalorder %s80, %s81
    %p90 = scmp.eq.s32.totalorder %s16, 0
    %p91 = por %p89, %p90
    %p92 = scmp.ne.s32.totalorder %s80, %s81
    %p93 = scmp.eq.s32.totalorder %s17, 1
    %p94 = por %p92, %p93
    %p96 = scmp.ne.s32.totalorder %s81, %s95
    %p97 = scmp.eq.s32.totalorder %s17, 0
    %p98 = por %p96, %p97
    %s99 = ssub.s32 %s18, %s30
    %s100 = ssub.s32 %s19, %s26
    %s101 = sor.u32 %s99, %s100
    %p102 = scmp.eq.s32.totalorder %s101, 0
    %s104 = sadd.s32 %s103, 1
    %s105 = scalar_select %p102, %s103, %s104
    %p108 = pneg %p102
    %p109 = scmp.eq.s32.totalorder %s11, 1
    %p110 = por %p108, %p109
    %p111 = scmp.ne.s32.totalorder %s103, %s106
    %p112 = scmp.eq.s32.totalorder %s11, 0
    %p113 = por %p111, %p112
    %p114 = scmp.ne.s32.totalorder %s103, %s106
    %p115 = scmp.eq.s32.totalorder %s16, 1
    %p116 = por %p114, %p115
    %p117 = scmp.ne.s32.totalorder %s106, %s107
    %p118 = scmp.eq.s32.totalorder %s16, 0
    %p119 = por %p117, %p118
    %p120 = scmp.ne.s32.totalorder %s106, %s107
    %p121 = scmp.eq.s32.totalorder %s17, 1
    %p122 = por %p120, %p121
    %p124 = scmp.ne.s32.totalorder %s107, %s123
    %p125 = scmp.eq.s32.totalorder %s17, 0
    %p126 = por %p124, %p125
    %s127 = ssub.s32 %s18, %s30
    %s128 = ssub.s32 %s19, %s26
    %s129 = sor.u32 %s127, %s128
    %p130 = scmp.eq.s32.totalorder %s129, 0
    %s132 = sadd.s32 %s131, 1
    %s133 = scalar_select %p130, %s131, %s132
    %p136 = pneg %p130
    %p137 = scmp.eq.s32.totalorder %s11, 1
    %p138 = por %p136, %p137
    %p139 = scmp.ne.s32.totalorder %s131, %s134
    %p140 = scmp.eq.s32.totalorder %s11, 0
    %p141 = por %p139, %p140
    %p142 = scmp.ne.s32.totalorder %s131, %s134
    %p143 = scmp.eq.s32.totalorder %s16, 1
    %p144 = por %p142, %p143
    %p145 = scmp.ne.s32.totalorder %s134, %s135
    %p146 = scmp.eq.s32.totalorder %s16, 0
    %p147 = por %p145, %p146
    %p148 = scmp.ne.s32.totalorder %s134, %s135
    %p149 = scmp.eq.s32.totalorder %s17, 1
    %p150 = por %p148, %p149
    %p152 = scmp.ne.s32.totalorder %s135, %s151
    %p153 = scmp.eq.s32.totalorder %s17, 0
    %p154 = por %p152, %p153
    %p155 = scmp.le.s32.totalorder 1, %s11
    %p156 = scmp.lt.s32.totalorder %s11, 3
    %p157 = pnand %p155, %p156
    %p158 = pneg %p157
    // Predicated region
    $region9: #{conv_bn_block_forward.2} parent=5 // pred_check
      _
    $region10: #{conv_bn_block_forward.2} parent=5 // pred_check_branch
      %160 = sbr.rel (%p157) target = $region12
    $region11: #{conv_bn_block_forward.2} parent=5 // pred_region
      %s161 = ssub.s32 %s11, 1
      // Predicated region
      $region13: #{conv_bn_block_forward.2} parent=11 // pred_check
        %p162 = pneg %p70
      $region14: #{conv_bn_block_forward.2} parent=11 // pred_check_branch
        %164 = sbr.rel (%p162) target = $region16
      $region15: #{conv_bn_block_forward.2} parent=11 // pred_region
        _
      $region16: #{conv_bn_block_forward.2} parent=11 // pred_fallthru
        _
      // Predicated region
      $region17: #{conv_bn_block_forward.2} parent=11 // pred_check
        %p165 = pneg %p91
      $region18: #{conv_bn_block_forward.2} parent=11 // pred_check_branch
        %167 = sbr.rel (%p165) target = $region20
      $region19: #{conv_bn_block_forward.2} parent=11 // pred_region
        _
      $region20: #{conv_bn_block_forward.2} parent=11 // pred_fallthru
        _
    $region12: #{conv_bn_block_forward.2} parent=5 // pred_fallthru
      _
    %p168 = scmp.lt.s32.totalorder %s11, 2
    // Predicated region
    $region21: #{conv_bn_block_forward.2} parent=5 // pred_check
      %p169 = pneg %p168
    $region22: #{conv_bn_block_forward.2} parent=5 // pred_check_branch
      %171 = sbr.rel (%p169) target = $region24
    $region23: #{conv_bn_block_forward.2} parent=5 // pred_region
      // Predicated region
      $region25: #{conv_bn_block_forward.2} parent=23 // pred_check
        %p172 = pneg %p43
      $region26: #{conv_bn_block_forward.2} parent=23 // pred_check_branch
        %174 = sbr.rel (%p172) target = $region28
      $region27: #{conv_bn_block_forward.2} parent=23 // pred_region
        %p175 = scmp.lt.s32.totalorder %s18, 1
        %s176 = scalar_select %p175, %s18, 1
        %s177 = smul.addr %s176, 54
        %s178 = smul.addr %s177, 8
        %s179 = scalar_lea.vmem %s0, %s178
      $region28: #{conv_bn_block_forward.2} parent=23 // pred_fallthru
        _
    $region24: #{conv_bn_block_forward.2} parent=5 // pred_fallthru
      _
    %p180 = scmp.le.s32.totalorder 1, %s11
    %p181 = scmp.lt.s32.totalorder %s11, 3
    %p182 = pnand %p180, %p181
    %p183 = pneg %p182
    // Predicated region
    $region29: #{conv_bn_block_forward.2} parent=5 // pred_check
      _
    $region30: #{conv_bn_block_forward.2} parent=5 // pred_check_branch
      %185 = sbr.rel (%p182) target = $region32
    $region31: #{conv_bn_block_forward.2} parent=5 // pred_region
      %s186 = ssub.s32 %s11, 1
      %p187 = scmp.lt.s32.totalorder %s20, 1
      %s188 = scalar_select %p187, %s20, 1
      %s189 = smul.addr %s188, 54
      %s190 = smul.addr %s189, 8
      %s191 = scalar_lea.vmem %s0, %s190
      %p192 = pneg %p49
      %p193 = pneg %p46
      %p194 = pneg %p70
      %p195 = pneg %p67
      %p196 = pneg %p91
      %p197 = pneg %p88
      %p198 = pneg %p119
      %p199 = pneg %p116
      %s200 = smul.u32 16, %s21
      %p201 = scmp.lt.s32.totalorder %s20, 1
      %s202 = scalar_select %p201, %s20, 1
      %p203 = scmp.lt.s32.totalorder %s200, 15
      %s204 = scalar_select %p203, %s200, 15
      %s205 = smul.addr %s204, 2
      %s206 = smul.addr %s202, 32
      %s207 = sadd.s32 %s205, %s206
      %s208 = smul.addr %s207, 8
      %s209 = scalar_lea.vmem %s3, %s208
      %p210 = pneg %p147
      %p211 = pneg %p144
      %p212 = scmp.lt.s32.totalorder %s20, 1
      %s213 = scalar_select %p212, %s20, 1
      %p214 = scmp.lt.s32.totalorder %s21, 0
      %s215 = scalar_select %p214, %s21, 0
      %s216 = sadd.s32 %s215, %s213
      %s217 = smul.addr %s216, 2
      %s218 = scalar_lea.vmem %s4, %s217
      %p219 = scmp.lt.s32.totalorder %s20, 1
      %s220 = scalar_select %p219, %s20, 1
      %s221 = smul.addr %s220, 54
      %s222 = smul.addr %s221, 8
      %s223 = scalar_lea.vmem %s0, %s222
      %s224 = smul.u32 16, %s21
      %p225 = scmp.lt.s32.totalorder %s20, 1
      %s226 = scalar_select %p225, %s20, 1
      %p227 = scmp.lt.s32.totalorder %s224, 15
      %s228 = scalar_select %p227, %s224, 15
      %s229 = smul.addr %s228, 2
      %s230 = smul.addr %s226, 32
      %s231 = sadd.s32 %s229, %s230
      %s232 = smul.addr %s231, 8
      %s233 = scalar_lea.vmem %s3, %s232
      %s234 = smul.u32 16, %s21
      %p235 = scmp.lt.s32.totalorder %s20, 1
      %s236 = scalar_select %p235, %s20, 1
      %p237 = scmp.lt.s32.totalorder %s21, 0
      %s238 = scalar_select %p237, %s21, 0
      %s239 = sadd.s32 %s238, %s236
      %s240 = smul.addr %s239, 2
      %s241 = scalar_lea.vmem %s4, %s240
      %s242 = smul.u32 %s21, 16
      %s243 = smul.u32 %s242, 24
      %s244 = scalar_lea.vmem %s223, %s243
      %v245 = vld [vmem:[%s244] sm:$0xff]
      %v246 = vld [vmem:[%s244 + $0x8] sm:$0xff]
      %v247 = vld [vmem:[%s244 + $0x18] sm:$0xff]
      %v248 = vld [vmem:[%s244 + $0x20] sm:$0xff]
      %v249 = vld [vmem:[%s244 + $0x30] sm:$0xff]
      %v250 = vld [vmem:[%s244 + $0x38] sm:$0xff]
      %v251 = vld [vmem:[%s244 + $0x48] sm:$0xff]
      %v252 = vld [vmem:[%s244 + $0x50] sm:$0xff]
      %v253 = vld [vmem:[%s244 + $0x60] sm:$0xff]
      %v254 = vld [vmem:[%s244 + $0x68] sm:$0xff]
      %v255 = vld [vmem:[%s244 + $0x78] sm:$0xff]
      %v256 = vld [vmem:[%s244 + $0x80] sm:$0xff]
      %v257 = vld [vmem:[%s244 + $0x90] sm:$0xff]
      %v258 = vld [vmem:[%s244 + $0x98] sm:$0xff]
      %v259 = vld [vmem:[%s244 + $0xa8] sm:$0xff]
      %v260 = vld [vmem:[%s244 + $0xb0] sm:$0xff]
      %v261 = vld [vmem:[%s244 + $0xc0] sm:$0xff]
      %v262 = vld [vmem:[%s244 + $0xc8] sm:$0xff]
      %v263 = vld [vmem:[%s244 + $0xd8] sm:$0xff]
      %v264 = vld [vmem:[%s244 + $0xe0] sm:$0xff]
      %v265 = vld [vmem:[%s244 + $0xf0] sm:$0xff]
      %v266 = vld [vmem:[%s244 + $0xf8] sm:$0xff]
      %v267 = vld [vmem:[%s244 + $0x108] sm:$0xff]
      %v268 = vld [vmem:[%s244 + $0x110] sm:$0xff]
      %v269 = vld [vmem:[%s244 + $0x120] sm:$0xff]
      %v270 = vld [vmem:[%s244 + $0x128] sm:$0xff]
      %v271 = vld [vmem:[%s244 + $0x138] sm:$0xff]
      %v272 = vld [vmem:[%s244 + $0x140] sm:$0xff]
      %v273 = vld [vmem:[%s244 + $0x150] sm:$0xff]
      %v274 = vld [vmem:[%s244 + $0x158] sm:$0xff]
      %v275 = vld [vmem:[%s244 + $0x168] sm:$0xff]
      %v276 = vld [vmem:[%s244 + $0x170] sm:$0xff]
      %v277 = vld [vmem:[%s244 + $0x1] sm:$0xff]
      %v278 = vld [vmem:[%s244 + $0x9] sm:$0xff]
      %v279 = vld [vmem:[%s244 + $0x19] sm:$0xff]
      %v280 = vld [vmem:[%s244 + $0x21] sm:$0xff]
      %v281 = vld [vmem:[%s244 + $0x31] sm:$0xff]
      %v282 = vld [vmem:[%s244 + $0x39] sm:$0xff]
      %v283 = vld [vmem:[%s244 + $0x49] sm:$0xff]
      %v284 = vld [vmem:[%s244 + $0x51] sm:$0xff]
      %v285 = vld [vmem:[%s244 + $0x61] sm:$0xff]
      %v286 = vld [vmem:[%s244 + $0x69] sm:$0xff]
      %v287 = vld [vmem:[%s244 + $0x79] sm:$0xff]
      %v288 = vld [vmem:[%s244 + $0x81] sm:$0xff]
      %v289 = vld [vmem:[%s244 + $0x91] sm:$0xff]
      %v290 = vld [vmem:[%s244 + $0x99] sm:$0xff]
      %v291 = vld [vmem:[%s244 + $0xa9] sm:$0xff]
      %v292 = vld [vmem:[%s244 + $0xb1] sm:$0xff]
      %v293 = vld [vmem:[%s244 + $0xc1] sm:$0xff]
      %v294 = vld [vmem:[%s244 + $0xc9] sm:$0xff]
      %v295 = vld [vmem:[%s244 + $0xd9] sm:$0xff]
      %v296 = vld [vmem:[%s244 + $0xe1] sm:$0xff]
      %v297 = vld [vmem:[%s244 + $0xf1] sm:$0xff]
      %v298 = vld [vmem:[%s244 + $0xf9] sm:$0xff]
      %v299 = vld [vmem:[%s244 + $0x109] sm:$0xff]
      %v300 = vld [vmem:[%s244 + $0x111] sm:$0xff]
      %v301 = vld [vmem:[%s244 + $0x121] sm:$0xff]
      %v302 = vld [vmem:[%s244 + $0x129] sm:$0xff]
      %v303 = vld [vmem:[%s244 + $0x139] sm:$0xff]
      %v304 = vld [vmem:[%s244 + $0x141] sm:$0xff]
      %v305 = vld [vmem:[%s244 + $0x151] sm:$0xff]
      %v306 = vld [vmem:[%s244 + $0x159] sm:$0xff]
      %v307 = vld [vmem:[%s244 + $0x169] sm:$0xff]
      %v308 = vld [vmem:[%s244 + $0x171] sm:$0xff]
      %v309 = vld [vmem:[%s244 + $0x2] sm:$0xff]
      %v310 = vld [vmem:[%s244 + $0xa] sm:$0xff]
      %v311 = vld [vmem:[%s244 + $0x1a] sm:$0xff]
      %v312 = vld [vmem:[%s244 + $0x22] sm:$0xff]
      %v313 = vld [vmem:[%s244 + $0x32] sm:$0xff]
      %v314 = vld [vmem:[%s244 + $0x3a] sm:$0xff]
      %v315 = vld [vmem:[%s244 + $0x4a] sm:$0xff]
      %v316 = vld [vmem:[%s244 + $0x52] sm:$0xff]
      %v317 = vld [vmem:[%s244 + $0x62] sm:$0xff]
      %v318 = vld [vmem:[%s244 + $0x6a] sm:$0xff]
      %v319 = vld [vmem:[%s244 + $0x7a] sm:$0xff]
      %v320 = vld [vmem:[%s244 + $0x82] sm:$0xff]
      %v321 = vld [vmem:[%s244 + $0x92] sm:$0xff]
      %v322 = vld [vmem:[%s244 + $0x9a] sm:$0xff]
      %v323 = vld [vmem:[%s244 + $0xaa] sm:$0xff]
      %v324 = vld [vmem:[%s244 + $0xb2] sm:$0xff]
      %v325 = vld [vmem:[%s244 + $0xc2] sm:$0xff]
      %v326 = vld [vmem:[%s244 + $0xca] sm:$0xff]
      %v327 = vld [vmem:[%s244 + $0xda] sm:$0xff]
      %v328 = vld [vmem:[%s244 + $0xe2] sm:$0xff]
      %v329 = vld [vmem:[%s244 + $0xf2] sm:$0xff]
      %v330 = vld [vmem:[%s244 + $0xfa] sm:$0xff]
      %v331 = vld [vmem:[%s244 + $0x10a] sm:$0xff]
      %v332 = vld [vmem:[%s244 + $0x112] sm:$0xff]
      %v333 = vld [vmem:[%s244 + $0x122] sm:$0xff]
      %v334 = vld [vmem:[%s244 + $0x12a] sm:$0xff]
      %v335 = vld [vmem:[%s244 + $0x13a] sm:$0xff]
      %v336 = vld [vmem:[%s244 + $0x142] sm:$0xff]
      %v337 = vld [vmem:[%s244 + $0x152] sm:$0xff]
      %v338 = vld [vmem:[%s244 + $0x15a] sm:$0xff]
      %v339 = vld [vmem:[%s244 + $0x16a] sm:$0xff]
      %v340 = vld [vmem:[%s244 + $0x172] sm:$0xff]
      %s341 = sadd.s32 %s242, 1
      %s342 = smul.u32 %s341, 24
      %s343 = scalar_lea.vmem %s223, %s342
      %v344 = vld [vmem:[%s343] sm:$0xff]
      %v345 = vld [vmem:[%s343 + $0x8] sm:$0xff]
      %v346 = vld [vmem:[%s343 + $0x18] sm:$0xff]
      %v347 = vld [vmem:[%s343 + $0x20] sm:$0xff]
      %v348 = vld [vmem:[%s343 + $0x30] sm:$0xff]
      %v349 = vld [vmem:[%s343 + $0x38] sm:$0xff]
      %v350 = vld [vmem:[%s343 + $0x48] sm:$0xff]
      %v351 = vld [vmem:[%s343 + $0x50] sm:$0xff]
      %v352 = vld [vmem:[%s343 + $0x60] sm:$0xff]
      %v353 = vld [vmem:[%s343 + $0x68] sm:$0xff]
      %v354 = vld [vmem:[%s343 + $0x78] sm:$0xff]
      %v355 = vld [vmem:[%s343 + $0x80] sm:$0xff]
      %v356 = vld [vmem:[%s343 + $0x90] sm:$0xff]
      %v357 = vld [vmem:[%s343 + $0x98] sm:$0xff]
      %v358 = vld [vmem:[%s343 + $0xa8] sm:$0xff]
      %v359 = vld [vmem:[%s343 + $0xb0] sm:$0xff]
      %v360 = vld [vmem:[%s343 + $0xc0] sm:$0xff]
      %v361 = vld [vmem:[%s343 + $0xc8] sm:$0xff]
      %v362 = vld [vmem:[%s343 + $0xd8] sm:$0xff]
      %v363 = vld [vmem:[%s343 + $0xe0] sm:$0xff]
      %v364 = vld [vmem:[%s343 + $0xf0] sm:$0xff]
      %v365 = vld [vmem:[%s343 + $0xf8] sm:$0xff]
      %v366 = vld [vmem:[%s343 + $0x108] sm:$0xff]
      %v367 = vld [vmem:[%s343 + $0x110] sm:$0xff]
      %v368 = vld [vmem:[%s343 + $0x120] sm:$0xff]
      %v369 = vld [vmem:[%s343 + $0x128] sm:$0xff]
      %v370 = vld [vmem:[%s343 + $0x138] sm:$0xff]
      %v371 = vld [vmem:[%s343 + $0x140] sm:$0xff]
      %v372 = vld [vmem:[%s343 + $0x150] sm:$0xff]
      %v373 = vld [vmem:[%s343 + $0x158] sm:$0xff]
      %v374 = vld [vmem:[%s343 + $0x168] sm:$0xff]
      %v375 = vld [vmem:[%s343 + $0x170] sm:$0xff]
      %v376 = vld [vmem:[%s343 + $0x1] sm:$0xff]
      %v377 = vld [vmem:[%s343 + $0x9] sm:$0xff]
      %v378 = vld [vmem:[%s343 + $0x19] sm:$0xff]
      %v379 = vld [vmem:[%s343 + $0x21] sm:$0xff]
      %v380 = vld [vmem:[%s343 + $0x31] sm:$0xff]
      %v381 = vld [vmem:[%s343 + $0x39] sm:$0xff]
      %v382 = vld [vmem:[%s343 + $0x49] sm:$0xff]
      %v383 = vld [vmem:[%s343 + $0x51] sm:$0xff]
      %v384 = vld [vmem:[%s343 + $0x61] sm:$0xff]
      %v385 = vld [vmem:[%s343 + $0x69] sm:$0xff]
      %v386 = vld [vmem:[%s343 + $0x79] sm:$0xff]
      %v387 = vld [vmem:[%s343 + $0x81] sm:$0xff]
      %v388 = vld [vmem:[%s343 + $0x91] sm:$0xff]
      %v389 = vld [vmem:[%s343 + $0x99] sm:$0xff]
      %v390 = vld [vmem:[%s343 + $0xa9] sm:$0xff]
      %v391 = vld [vmem:[%s343 + $0xb1] sm:$0xff]
      %v392 = vld [vmem:[%s343 + $0xc1] sm:$0xff]
      %v393 = vld [vmem:[%s343 + $0xc9] sm:$0xff]
      %v394 = vld [vmem:[%s343 + $0xd9] sm:$0xff]
      %v395 = vld [vmem:[%s343 + $0xe1] sm:$0xff]
      %v396 = vld [vmem:[%s343 + $0xf1] sm:$0xff]
      %v397 = vld [vmem:[%s343 + $0xf9] sm:$0xff]
      %v398 = vld [vmem:[%s343 + $0x109] sm:$0xff]
      %v399 = vld [vmem:[%s343 + $0x111] sm:$0xff]
      %v400 = vld [vmem:[%s343 + $0x121] sm:$0xff]
      %v401 = vld [vmem:[%s343 + $0x129] sm:$0xff]
      %v402 = vld [vmem:[%s343 + $0x139] sm:$0xff]
      %v403 = vld [vmem:[%s343 + $0x141] sm:$0xff]
      %v404 = vld [vmem:[%s343 + $0x151] sm:$0xff]
      %v405 = vld [vmem:[%s343 + $0x159] sm:$0xff]
      %v406 = vld [vmem:[%s343 + $0x169] sm:$0xff]
      %v407 = vld [vmem:[%s343 + $0x171] sm:$0xff]
      %v408 = vld [vmem:[%s343 + $0x2] sm:$0xff]
      %v409 = vld [vmem:[%s343 + $0xa] sm:$0xff]
      %v410 = vld [vmem:[%s343 + $0x1a] sm:$0xff]
      %v411 = vld [vmem:[%s343 + $0x22] sm:$0xff]
      %v412 = vld [vmem:[%s343 + $0x32] sm:$0xff]
      %v413 = vld [vmem:[%s343 + $0x3a] sm:$0xff]
      %v414 = vld [vmem:[%s343 + $0x4a] sm:$0xff]
      %v415 = vld [vmem:[%s343 + $0x52] sm:$0xff]
      %v416 = vld [vmem:[%s343 + $0x62] sm:$0xff]
      %v417 = vld [vmem:[%s343 + $0x6a] sm:$0xff]
      %v418 = vld [vmem:[%s343 + $0x7a] sm:$0xff]
      %v419 = vld [vmem:[%s343 + $0x82] sm:$0xff]
      %v420 = vld [vmem:[%s343 + $0x92] sm:$0xff]
      %v421 = vld [vmem:[%s343 + $0x9a] sm:$0xff]
      %v422 = vld [vmem:[%s343 + $0xaa] sm:$0xff]
      %v423 = vld [vmem:[%s343 + $0xb2] sm:$0xff]
      %v424 = vld [vmem:[%s343 + $0xc2] sm:$0xff]
      %v425 = vld [vmem:[%s343 + $0xca] sm:$0xff]
      %v426 = vld [vmem:[%s343 + $0xda] sm:$0xff]
      %v427 = vld [vmem:[%s343 + $0xe2] sm:$0xff]
      %v428 = vld [vmem:[%s343 + $0xf2] sm:$0xff]
      %v429 = vld [vmem:[%s343 + $0xfa] sm:$0xff]
      %v430 = vld [vmem:[%s343 + $0x10a] sm:$0xff]
      %v431 = vld [vmem:[%s343 + $0x112] sm:$0xff]
      %v432 = vld [vmem:[%s343 + $0x122] sm:$0xff]
      %v433 = vld [vmem:[%s343 + $0x12a] sm:$0xff]
      %v434 = vld [vmem:[%s343 + $0x13a] sm:$0xff]
      %v435 = vld [vmem:[%s343 + $0x142] sm:$0xff]
      %v436 = vld [vmem:[%s343 + $0x152] sm:$0xff]
      %v437 = vld [vmem:[%s343 + $0x15a] sm:$0xff]
      %v438 = vld [vmem:[%s343 + $0x16a] sm:$0xff]
      %v439 = vld [vmem:[%s343 + $0x172] sm:$0xff]
      %s440 = sadd.s32 %s242, 2
      %s441 = smul.u32 %s440, 24
      %s442 = scalar_lea.vmem %s223, %s441
      %v443 = vld [vmem:[%s442] sm:$0xff]
      %v444 = vld [vmem:[%s442 + $0x8] sm:$0xff]
      %v445 = vld [vmem:[%s442 + $0x18] sm:$0xff]
      %v446 = vld [vmem:[%s442 + $0x20] sm:$0xff]
      %v447 = vld [vmem:[%s442 + $0x30] sm:$0xff]
      %v448 = vld [vmem:[%s442 + $0x38] sm:$0xff]
      %v449 = vld [vmem:[%s442 + $0x48] sm:$0xff]
      %v450 = vld [vmem:[%s442 + $0x50] sm:$0xff]
      %v451 = vld [vmem:[%s442 + $0x60] sm:$0xff]
      %v452 = vld [vmem:[%s442 + $0x68] sm:$0xff]
      %v453 = vld [vmem:[%s442 + $0x78] sm:$0xff]
      %v454 = vld [vmem:[%s442 + $0x80] sm:$0xff]
      %v455 = vld [vmem:[%s442 + $0x90] sm:$0xff]
      %v456 = vld [vmem:[%s442 + $0x98] sm:$0xff]
      %v457 = vld [vmem:[%s442 + $0xa8] sm:$0xff]
      %v458 = vld [vmem:[%s442 + $0xb0] sm:$0xff]
      %v459 = vld [vmem:[%s442 + $0xc0] sm:$0xff]
      %v460 = vld [vmem:[%s442 + $0xc8] sm:$0xff]
      %v461 = vld [vmem:[%s442 + $0xd8] sm:$0xff]
      %v462 = vld [vmem:[%s442 + $0xe0] sm:$0xff]
      %v463 = vld [vmem:[%s442 + $0xf0] sm:$0xff]
      %v464 = vld [vmem:[%s442 + $0xf8] sm:$0xff]
      %v465 = vld [vmem:[%s442 + $0x108] sm:$0xff]
      %v466 = vld [vmem:[%s442 + $0x110] sm:$0xff]
      %v467 = vld [vmem:[%s442 + $0x120] sm:$0xff]
      %v468 = vld [vmem:[%s442 + $0x128] sm:$0xff]
      %v469 = vld [vmem:[%s442 + $0x138] sm:$0xff]
      %v470 = vld [vmem:[%s442 + $0x140] sm:$0xff]
      %v471 = vld [vmem:[%s442 + $0x150] sm:$0xff]
      %v472 = vld [vmem:[%s442 + $0x158] sm:$0xff]
      %v473 = vld [vmem:[%s442 + $0x168] sm:$0xff]
      %v474 = vld [vmem:[%s442 + $0x170] sm:$0xff]
      %v475 = vld [vmem:[%s442 + $0x1] sm:$0xff]
      %v476 = vld [vmem:[%s442 + $0x9] sm:$0xff]
      %v477 = vld [vmem:[%s442 + $0x19] sm:$0xff]
      %v478 = vld [vmem:[%s442 + $0x21] sm:$0xff]
      %v479 = vld [vmem:[%s442 + $0x31] sm:$0xff]
      %v480 = vld [vmem:[%s442 + $0x39] sm:$0xff]
      %v481 = vld [vmem:[%s442 + $0x49] sm:$0xff]
      %v482 = vld [vmem:[%s442 + $0x51] sm:$0xff]
      %v483 = vld [vmem:[%s442 + $0x61] sm:$0xff]
      %v484 = vld [vmem:[%s442 + $0x69] sm:$0xff]
      %v485 = vld [vmem:[%s442 + $0x79] sm:$0xff]
      %v486 = vld [vmem:[%s442 + $0x81] sm:$0xff]
      %v487 = vld [vmem:[%s442 + $0x91] sm:$0xff]
      %v488 = vld [vmem:[%s442 + $0x99] sm:$0xff]
      %v489 = vld [vmem:[%s442 + $0xa9] sm:$0xff]
      %v490 = vld [vmem:[%s442 + $0xb1] sm:$0xff]
      %v491 = vld [vmem:[%s442 + $0xc1] sm:$0xff]
      %v492 = vld [vmem:[%s442 + $0xc9] sm:$0xff]
      %v493 = vld [vmem:[%s442 + $0xd9] sm:$0xff]
      %v494 = vld [vmem:[%s442 + $0xe1] sm:$0xff]
      %v495 = vld [vmem:[%s442 + $0xf1] sm:$0xff]
      %v496 = vld [vmem:[%s442 + $0xf9] sm:$0xff]
      %v497 = vld [vmem:[%s442 + $0x109] sm:$0xff]
      %v498 = vld [vmem:[%s442 + $0x111] sm:$0xff]
      %v499 = vld [vmem:[%s442 + $0x121] sm:$0xff]
      %v500 = vld [vmem:[%s442 + $0x129] sm:$0xff]
      %v501 = vld [vmem:[%s442 + $0x139] sm:$0xff]
      %v502 = vld [vmem:[%s442 + $0x141] sm:$0xff]
      %v503 = vld [vmem:[%s442 + $0x151] sm:$0xff]
      %v504 = vld [vmem:[%s442 + $0x159] sm:$0xff]
      %v505 = vld [vmem:[%s442 + $0x169] sm:$0xff]
      %v506 = vld [vmem:[%s442 + $0x171] sm:$0xff]
      %v507 = vld [vmem:[%s442 + $0x2] sm:$0xff]
      %v508 = vld [vmem:[%s442 + $0xa] sm:$0xff]
      %v509 = vld [vmem:[%s442 + $0x1a] sm:$0xff]
      %v510 = vld [vmem:[%s442 + $0x22] sm:$0xff]
      %v511 = vld [vmem:[%s442 + $0x32] sm:$0xff]
      %v512 = vld [vmem:[%s442 + $0x3a] sm:$0xff]
      %v513 = vld [vmem:[%s442 + $0x4a] sm:$0xff]
      %v514 = vld [vmem:[%s442 + $0x52] sm:$0xff]
      %v515 = vld [vmem:[%s442 + $0x62] sm:$0xff]
      %v516 = vld [vmem:[%s442 + $0x6a] sm:$0xff]
      %v517 = vld [vmem:[%s442 + $0x7a] sm:$0xff]
      %v518 = vld [vmem:[%s442 + $0x82] sm:$0xff]
      %v519 = vld [vmem:[%s442 + $0x92] sm:$0xff]
      %v520 = vld [vmem:[%s442 + $0x9a] sm:$0xff]
      %v521 = vld [vmem:[%s442 + $0xaa] sm:$0xff]
      %v522 = vld [vmem:[%s442 + $0xb2] sm:$0xff]
      %v523 = vld [vmem:[%s442 + $0xc2] sm:$0xff]
      %v524 = vld [vmem:[%s442 + $0xca] sm:$0xff]
      %v525 = vld [vmem:[%s442 + $0xda] sm:$0xff]
      %v526 = vld [vmem:[%s442 + $0xe2] sm:$0xff]
      %v527 = vld [vmem:[%s442 + $0xf2] sm:$0xff]
      %v528 = vld [vmem:[%s442 + $0xfa] sm:$0xff]
      %v529 = vld [vmem:[%s442 + $0x10a] sm:$0xff]
      %v530 = vld [vmem:[%s442 + $0x112] sm:$0xff]
      %v531 = vld [vmem:[%s442 + $0x122] sm:$0xff]
      %v532 = vld [vmem:[%s442 + $0x12a] sm:$0xff]
      %v533 = vld [vmem:[%s442 + $0x13a] sm:$0xff]
      %v534 = vld [vmem:[%s442 + $0x142] sm:$0xff]
      %v535 = vld [vmem:[%s442 + $0x152] sm:$0xff]
      %v536 = vld [vmem:[%s442 + $0x15a] sm:$0xff]
      %v537 = vld [vmem:[%s442 + $0x16a] sm:$0xff]
      %v538 = vld [vmem:[%s442 + $0x172] sm:$0xff]
      %571 = vrot.lane.b32.xlu0 %v277, 4
      %v572 = vpop.permute.xlu0 %571
      %573 = vrot.lane.b32.xlu0 %v278, 4
      %v574 = vpop.permute.xlu0 %573
      %575 = vrot.lane.b32.xlu0 %v279, 4
      %v576 = vpop.permute.xlu0 %575
      %577 = vrot.lane.b32.xlu0 %v280, 4
      %v578 = vpop.permute.xlu0 %577
      %579 = vrot.lane.b32.xlu0 %v281, 4
      %v580 = vpop.permute.xlu0 %579
      %581 = vrot.lane.b32.xlu0 %v282, 4
      %v582 = vpop.permute.xlu0 %581
      %583 = vrot.lane.b32.xlu0 %v283, 4
      %v584 = vpop.permute.xlu0 %583
      %585 = vrot.lane.b32.xlu0 %v284, 4
      %v586 = vpop.permute.xlu0 %585
      %587 = vrot.lane.b32.xlu0 %v285, 4
      %v588 = vpop.permute.xlu0 %587
      %589 = vrot.lane.b32.xlu0 %v286, 4
      %v590 = vpop.permute.xlu0 %589
      %591 = vrot.lane.b32.xlu0 %v287, 4
      %v592 = vpop.permute.xlu0 %591
      %593 = vrot.lane.b32.xlu0 %v288, 4
      %v594 = vpop.permute.xlu0 %593
      %595 = vrot.lane.b32.xlu0 %v289, 4
      %v596 = vpop.permute.xlu0 %595
      %597 = vrot.lane.b32.xlu0 %v290, 4
      %v598 = vpop.permute.xlu0 %597
      %599 = vrot.lane.b32.xlu0 %v291, 4
      %v600 = vpop.permute.xlu0 %599
      %601 = vrot.lane.b32.xlu0 %v292, 4
      %v602 = vpop.permute.xlu0 %601
      %603 = vrot.lane.b32.xlu0 %v293, 4
      %v604 = vpop.permute.xlu0 %603
      %605 = vrot.lane.b32.xlu0 %v294, 4
      %v606 = vpop.permute.xlu0 %605
      %607 = vrot.lane.b32.xlu0 %v295, 4
      %v608 = vpop.permute.xlu0 %607
      %609 = vrot.lane.b32.xlu0 %v296, 4
      %v610 = vpop.permute.xlu0 %609
      %611 = vrot.lane.b32.xlu0 %v297, 4
      %v612 = vpop.permute.xlu0 %611
      %613 = vrot.lane.b32.xlu0 %v298, 4
      %v614 = vpop.permute.xlu0 %613
      %615 = vrot.lane.b32.xlu0 %v299, 4
      %v616 = vpop.permute.xlu0 %615
      %617 = vrot.lane.b32.xlu0 %v300, 4
      %v618 = vpop.permute.xlu0 %617
      %619 = vrot.lane.b32.xlu0 %v301, 4
      %v620 = vpop.permute.xlu0 %619
      %621 = vrot.lane.b32.xlu0 %v302, 4
      %v622 = vpop.permute.xlu0 %621
      %623 = vrot.lane.b32.xlu0 %v303, 4
      %v624 = vpop.permute.xlu0 %623
      %625 = vrot.lane.b32.xlu0 %v304, 4
      %v626 = vpop.permute.xlu0 %625
      %627 = vrot.lane.b32.xlu0 %v305, 4
      %v628 = vpop.permute.xlu0 %627
      %629 = vrot.lane.b32.xlu0 %v306, 4
      %v630 = vpop.permute.xlu0 %629
      %631 = vrot.lane.b32.xlu0 %v307, 4
      %v632 = vpop.permute.xlu0 %631
      %633 = vrot.lane.b32.xlu0 %v308, 4
      %v634 = vpop.permute.xlu0 %633
      %699 = vrot.lane.b32.xlu0 %v309, 8
      %v700 = vpop.permute.xlu0 %699
      %701 = vrot.lane.b32.xlu0 %v310, 8
      %v702 = vpop.permute.xlu0 %701
      %703 = vrot.lane.b32.xlu0 %v311, 8
      %v704 = vpop.permute.xlu0 %703
      %705 = vrot.lane.b32.xlu0 %v312, 8
      %v706 = vpop.permute.xlu0 %705
      %707 = vrot.lane.b32.xlu0 %v313, 8
      %v708 = vpop.permute.xlu0 %707
      %709 = vrot.lane.b32.xlu0 %v314, 8
      %v710 = vpop.permute.xlu0 %709
      %711 = vrot.lane.b32.xlu0 %v315, 8
      %v712 = vpop.permute.xlu0 %711
      %713 = vrot.lane.b32.xlu0 %v316, 8
      %v714 = vpop.permute.xlu0 %713
      %715 = vrot.lane.b32.xlu0 %v317, 8
      %v716 = vpop.permute.xlu0 %715
      %717 = vrot.lane.b32.xlu0 %v318, 8
      %v718 = vpop.permute.xlu0 %717
      %719 = vrot.lane.b32.xlu0 %v319, 8
      %v720 = vpop.permute.xlu0 %719
      %721 = vrot.lane.b32.xlu0 %v320, 8
      %v722 = vpop.permute.xlu0 %721
      %723 = vrot.lane.b32.xlu0 %v321, 8
      %v724 = vpop.permute.xlu0 %723
      %725 = vrot.lane.b32.xlu0 %v322, 8
      %v726 = vpop.permute.xlu0 %725
      %727 = vrot.lane.b32.xlu0 %v323, 8
      %v728 = vpop.permute.xlu0 %727
      %729 = vrot.lane.b32.xlu0 %v324, 8
      %v730 = vpop.permute.xlu0 %729
      %731 = vrot.lane.b32.xlu0 %v325, 8
      %v732 = vpop.permute.xlu0 %731
      %733 = vrot.lane.b32.xlu0 %v326, 8
      %v734 = vpop.permute.xlu0 %733
      %735 = vrot.lane.b32.xlu0 %v327, 8
      %v736 = vpop.permute.xlu0 %735
      %737 = vrot.lane.b32.xlu0 %v328, 8
      %v738 = vpop.permute.xlu0 %737
      %739 = vrot.lane.b32.xlu0 %v329, 8
      %v740 = vpop.permute.xlu0 %739
      %741 = vrot.lane.b32.xlu0 %v330, 8
      %v742 = vpop.permute.xlu0 %741
      %743 = vrot.lane.b32.xlu0 %v331, 8
      %v744 = vpop.permute.xlu0 %743
      %745 = vrot.lane.b32.xlu0 %v332, 8
      %v746 = vpop.permute.xlu0 %745
      %747 = vrot.lane.b32.xlu0 %v333, 8
      %v748 = vpop.permute.xlu0 %747
      %749 = vrot.lane.b32.xlu0 %v334, 8
      %v750 = vpop.permute.xlu0 %749
      %751 = vrot.lane.b32.xlu0 %v335, 8
      %v752 = vpop.permute.xlu0 %751
      %753 = vrot.lane.b32.xlu0 %v336, 8
      %v754 = vpop.permute.xlu0 %753
      %755 = vrot.lane.b32.xlu0 %v337, 8
      %v756 = vpop.permute.xlu0 %755
      %757 = vrot.lane.b32.xlu0 %v338, 8
      %v758 = vpop.permute.xlu0 %757
      %759 = vrot.lane.b32.xlu0 %v339, 8
      %v760 = vpop.permute.xlu0 %759
      %761 = vrot.lane.b32.xlu0 %v340, 8
      %v762 = vpop.permute.xlu0 %761
      %827 = vrot.lane.b32.xlu0 %v344, 12
      %v828 = vpop.permute.xlu0 %827
      %829 = vrot.lane.b32.xlu0 %v345, 12
      %v830 = vpop.permute.xlu0 %829
      %831 = vrot.lane.b32.xlu0 %v346, 12
      %v832 = vpop.permute.xlu0 %831
      %833 = vrot.lane.b32.xlu0 %v347, 12
      %v834 = vpop.permute.xlu0 %833
      %835 = vrot.lane.b32.xlu0 %v348, 12
      %v836 = vpop.permute.xlu0 %835
      %837 = vrot.lane.b32.xlu0 %v349, 12
      %v838 = vpop.permute.xlu0 %837
      %839 = vrot.lane.b32.xlu0 %v350, 12
      %v840 = vpop.permute.xlu0 %839
      %841 = vrot.lane.b32.xlu0 %v351, 12
      %v842 = vpop.permute.xlu0 %841
      %843 = vrot.lane.b32.xlu0 %v352, 12
      %v844 = vpop.permute.xlu0 %843
      %845 = vrot.lane.b32.xlu0 %v353, 12
      %v846 = vpop.permute.xlu0 %845
      %847 = vrot.lane.b32.xlu0 %v354, 12
      %v848 = vpop.permute.xlu0 %847
      %849 = vrot.lane.b32.xlu0 %v355, 12
      %v850 = vpop.permute.xlu0 %849
      %851 = vrot.lane.b32.xlu0 %v356, 12
      %v852 = vpop.permute.xlu0 %851
      %853 = vrot.lane.b32.xlu0 %v357, 12
      %v854 = vpop.permute.xlu0 %853
      %855 = vrot.lane.b32.xlu0 %v358, 12
      %v856 = vpop.permute.xlu0 %855
      %857 = vrot.lane.b32.xlu0 %v359, 12
      %v858 = vpop.permute.xlu0 %857
      %859 = vrot.lane.b32.xlu0 %v360, 12
      %v860 = vpop.permute.xlu0 %859
      %861 = vrot.lane.b32.xlu0 %v361, 12
      %v862 = vpop.permute.xlu0 %861
      %863 = vrot.lane.b32.xlu0 %v362, 12
      %v864 = vpop.permute.xlu0 %863
      %865 = vrot.lane.b32.xlu0 %v363, 12
      %v866 = vpop.permute.xlu0 %865
      %867 = vrot.lane.b32.xlu0 %v364, 12
      %v868 = vpop.permute.xlu0 %867
      %869 = vrot.lane.b32.xlu0 %v365, 12
      %v870 = vpop.permute.xlu0 %869
      %871 = vrot.lane.b32.xlu0 %v366, 12
      %v872 = vpop.permute.xlu0 %871
      %873 = vrot.lane.b32.xlu0 %v367, 12
      %v874 = vpop.permute.xlu0 %873
      %875 = vrot.lane.b32.xlu0 %v368, 12
      %v876 = vpop.permute.xlu0 %875
      %877 = vrot.lane.b32.xlu0 %v369, 12
      %v878 = vpop.permute.xlu0 %877
      %879 = vrot.lane.b32.xlu0 %v370, 12
      %v880 = vpop.permute.xlu0 %879
      %881 = vrot.lane.b32.xlu0 %v371, 12
      %v882 = vpop.permute.xlu0 %881
      %883 = vrot.lane.b32.xlu0 %v372, 12
      %v884 = vpop.permute.xlu0 %883
      %885 = vrot.lane.b32.xlu0 %v373, 12
      %v886 = vpop.permute.xlu0 %885
      %887 = vrot.lane.b32.xlu0 %v374, 12
      %v888 = vpop.permute.xlu0 %887
      %889 = vrot.lane.b32.xlu0 %v375, 12
      %v890 = vpop.permute.xlu0 %889
      %955 = vrot.lane.b32.xlu0 %v376, 16
      %v956 = vpop.permute.xlu0 %955
      %957 = vrot.lane.b32.xlu0 %v377, 16
      %v958 = vpop.permute.xlu0 %957
      %959 = vrot.lane.b32.xlu0 %v378, 16
      %v960 = vpop.permute.xlu0 %959
      %961 = vrot.lane.b32.xlu0 %v379, 16
      %v962 = vpop.permute.xlu0 %961
      %963 = vrot.lane.b32.xlu0 %v380, 16
      %v964 = vpop.permute.xlu0 %963
      %965 = vrot.lane.b32.xlu0 %v381, 16
      %v966 = vpop.permute.xlu0 %965
      %967 = vrot.lane.b32.xlu0 %v382, 16
      %v968 = vpop.permute.xlu0 %967
      %969 = vrot.lane.b32.xlu0 %v383, 16
      %v970 = vpop.permute.xlu0 %969
      %971 = vrot.lane.b32.xlu0 %v384, 16
      %v972 = vpop.permute.xlu0 %971
      %973 = vrot.lane.b32.xlu0 %v385, 16
      %v974 = vpop.permute.xlu0 %973
      %975 = vrot.lane.b32.xlu0 %v386, 16
      %v976 = vpop.permute.xlu0 %975
      %977 = vrot.lane.b32.xlu0 %v387, 16
      %v978 = vpop.permute.xlu0 %977
      %979 = vrot.lane.b32.xlu0 %v388, 16
      %v980 = vpop.permute.xlu0 %979
      %981 = vrot.lane.b32.xlu0 %v389, 16
      %v982 = vpop.permute.xlu0 %981
      %983 = vrot.lane.b32.xlu0 %v390, 16
      %v984 = vpop.permute.xlu0 %983
      %985 = vrot.lane.b32.xlu0 %v391, 16
      %v986 = vpop.permute.xlu0 %985
      %987 = vrot.lane.b32.xlu0 %v392, 16
      %v988 = vpop.permute.xlu0 %987
      %989 = vrot.lane.b32.xlu0 %v393, 16
      %v990 = vpop.permute.xlu0 %989
      %991 = vrot.lane.b32.xlu0 %v394, 16
      %v992 = vpop.permute.xlu0 %991
      %993 = vrot.lane.b32.xlu0 %v395, 16
      %v994 = vpop.permute.xlu0 %993
      %995 = vrot.lane.b32.xlu0 %v396, 16
      %v996 = vpop.permute.xlu0 %995
      %997 = vrot.lane.b32.xlu0 %v397, 16
      %v998 = vpop.permute.xlu0 %997
      %999 = vrot.lane.b32.xlu0 %v398, 16
      %v1000 = vpop.permute.xlu0 %999
      %1001 = vrot.lane.b32.xlu0 %v399, 16
      %v1002 = vpop.permute.xlu0 %1001
      %1003 = vrot.lane.b32.xlu0 %v400, 16
      %v1004 = vpop.permute.xlu0 %1003
      %1005 = vrot.lane.b32.xlu0 %v401, 16
      %v1006 = vpop.permute.xlu0 %1005
      %1007 = vrot.lane.b32.xlu0 %v402, 16
      %v1008 = vpop.permute.xlu0 %1007
      %1009 = vrot.lane.b32.xlu0 %v403, 16
      %v1010 = vpop.permute.xlu0 %1009
      %1011 = vrot.lane.b32.xlu0 %v404, 16
      %v1012 = vpop.permute.xlu0 %1011
      %1013 = vrot.lane.b32.xlu0 %v405, 16
      %v1014 = vpop.permute.xlu0 %1013
      %1015 = vrot.lane.b32.xlu0 %v406, 16
      %v1016 = vpop.permute.xlu0 %1015
      %1017 = vrot.lane.b32.xlu0 %v407, 16
      %v1018 = vpop.permute.xlu0 %1017
      %1083 = vrot.lane.b32.xlu0 %v408, 20
      %v1084 = vpop.permute.xlu0 %1083
      %1085 = vrot.lane.b32.xlu0 %v409, 20
      %v1086 = vpop.permute.xlu0 %1085
      %1087 = vrot.lane.b32.xlu0 %v410, 20
      %v1088 = vpop.permute.xlu0 %1087
      %1089 = vrot.lane.b32.xlu0 %v411, 20
      %v1090 = vpop.permute.xlu0 %1089
      %1091 = vrot.lane.b32.xlu0 %v412, 20
      %v1092 = vpop.permute.xlu0 %1091
      %1093 = vrot.lane.b32.xlu0 %v413, 20
      %v1094 = vpop.permute.xlu0 %1093
      %1095 = vrot.lane.b32.xlu0 %v414, 20
      %v1096 = vpop.permute.xlu0 %1095
      %1097 = vrot.lane.b32.xlu0 %v415, 20
      %v1098 = vpop.permute.xlu0 %1097
      %1099 = vrot.lane.b32.xlu0 %v416, 20
      %v1100 = vpop.permute.xlu0 %1099
      %1101 = vrot.lane.b32.xlu0 %v417, 20
      %v1102 = vpop.permute.xlu0 %1101
      %1103 = vrot.lane.b32.xlu0 %v418, 20
      %v1104 = vpop.permute.xlu0 %1103
      %1105 = vrot.lane.b32.xlu0 %v419, 20
      %v1106 = vpop.permute.xlu0 %1105
      %1107 = vrot.lane.b32.xlu0 %v420, 20
      %v1108 = vpop.permute.xlu0 %1107
      %1109 = vrot.lane.b32.xlu0 %v421, 20
      %v1110 = vpop.permute.xlu0 %1109
      %1111 = vrot.lane.b32.xlu0 %v422, 20
      %v1112 = vpop.permute.xlu0 %1111
      %1113 = vrot.lane.b32.xlu0 %v423, 20
      %v1114 = vpop.permute.xlu0 %1113
      %1115 = vrot.lane.b32.xlu0 %v424, 20
      %v1116 = vpop.permute.xlu0 %1115
      %1117 = vrot.lane.b32.xlu0 %v425, 20
      %v1118 = vpop.permute.xlu0 %1117
      %1119 = vrot.lane.b32.xlu0 %v426, 20
      %v1120 = vpop.permute.xlu0 %1119
      %1121 = vrot.lane.b32.xlu0 %v427, 20
      %v1122 = vpop.permute.xlu0 %1121
      %1123 = vrot.lane.b32.xlu0 %v428, 20
      %v1124 = vpop.permute.xlu0 %1123
      %1125 = vrot.lane.b32.xlu0 %v429, 20
      %v1126 = vpop.permute.xlu0 %1125
      %1127 = vrot.lane.b32.xlu0 %v430, 20
      %v1128 = vpop.permute.xlu0 %1127
      %1129 = vrot.lane.b32.xlu0 %v431, 20
      %v1130 = vpop.permute.xlu0 %1129
      %1131 = vrot.lane.b32.xlu0 %v432, 20
      %v1132 = vpop.permute.xlu0 %1131
      %1133 = vrot.lane.b32.xlu0 %v433, 20
      %v1134 = vpop.permute.xlu0 %1133
      %1135 = vrot.lane.b32.xlu0 %v434, 20
      %v1136 = vpop.permute.xlu0 %1135
      %1137 = vrot.lane.b32.xlu0 %v435, 20
      %v1138 = vpop.permute.xlu0 %1137
      %1139 = vrot.lane.b32.xlu0 %v436, 20
      %v1140 = vpop.permute.xlu0 %1139
      %1141 = vrot.lane.b32.xlu0 %v437, 20
      %v1142 = vpop.permute.xlu0 %1141
      %1143 = vrot.lane.b32.xlu0 %v438, 20
      %v1144 = vpop.permute.xlu0 %1143
      %1145 = vrot.lane.b32.xlu0 %v439, 20
      %v1146 = vpop.permute.xlu0 %1145
      %1211 = vrot.lane.b32.xlu0 %v443, 24
      %v1212 = vpop.permute.xlu0 %1211
      %1213 = vrot.lane.b32.xlu0 %v444, 24
      %v1214 = vpop.permute.xlu0 %1213
      %1215 = vrot.lane.b32.xlu0 %v445, 24
      %v1216 = vpop.permute.xlu0 %1215
      %1217 = vrot.lane.b32.xlu0 %v446, 24
      %v1218 = vpop.permute.xlu0 %1217
      %1219 = vrot.lane.b32.xlu0 %v447, 24
      %v1220 = vpop.permute.xlu0 %1219
      %1221 = vrot.lane.b32.xlu0 %v448, 24
      %v1222 = vpop.permute.xlu0 %1221
      %1223 = vrot.lane.b32.xlu0 %v449, 24
      %v1224 = vpop.permute.xlu0 %1223
      %1225 = vrot.lane.b32.xlu0 %v450, 24
      %v1226 = vpop.permute.xlu0 %1225
      %1227 = vrot.lane.b32.xlu0 %v451, 24
      %v1228 = vpop.permute.xlu0 %1227
      %1229 = vrot.lane.b32.xlu0 %v452, 24
      %v1230 = vpop.permute.xlu0 %1229
      %1231 = vrot.lane.b32.xlu0 %v453, 24
      %v1232 = vpop.permute.xlu0 %1231
      %1233 = vrot.lane.b32.xlu0 %v454, 24
      %v1234 = vpop.permute.xlu0 %1233
      %1235 = vrot.lane.b32.xlu0 %v455, 24
      %v1236 = vpop.permute.xlu0 %1235
      %1237 = vrot.lane.b32.xlu0 %v456, 24
      %v1238 = vpop.permute.xlu0 %1237
      %1239 = vrot.lane.b32.xlu0 %v457, 24
      %v1240 = vpop.permute.xlu0 %1239
      %1241 = vrot.lane.b32.xlu0 %v458, 24
      %v1242 = vpop.permute.xlu0 %1241
      %1243 = vrot.lane.b32.xlu0 %v459, 24
      %v1244 = vpop.permute.xlu0 %1243
      %1245 = vrot.lane.b32.xlu0 %v460, 24
      %v1246 = vpop.permute.xlu0 %1245
      %1247 = vrot.lane.b32.xlu0 %v461, 24
      %v1248 = vpop.permute.xlu0 %1247
      %1249 = vrot.lane.b32.xlu0 %v462, 24
      %v1250 = vpop.permute.xlu0 %1249
      %1251 = vrot.lane.b32.xlu0 %v463, 24
      %v1252 = vpop.permute.xlu0 %1251
      %1253 = vrot.lane.b32.xlu0 %v464, 24
      %v1254 = vpop.permute.xlu0 %1253
      %1255 = vrot.lane.b32.xlu0 %v465, 24
      %v1256 = vpop.permute.xlu0 %1255
      %1257 = vrot.lane.b32.xlu0 %v466, 24
      %v1258 = vpop.permute.xlu0 %1257
      %1259 = vrot.lane.b32.xlu0 %v467, 24
      %v1260 = vpop.permute.xlu0 %1259
      %1261 = vrot.lane.b32.xlu0 %v468, 24
      %v1262 = vpop.permute.xlu0 %1261
      %1263 = vrot.lane.b32.xlu0 %v469, 24
      %v1264 = vpop.permute.xlu0 %1263
      %1265 = vrot.lane.b32.xlu0 %v470, 24
      %v1266 = vpop.permute.xlu0 %1265
      %1267 = vrot.lane.b32.xlu0 %v471, 24
      %v1268 = vpop.permute.xlu0 %1267
      %1269 = vrot.lane.b32.xlu0 %v472, 24
      %v1270 = vpop.permute.xlu0 %1269
      %1271 = vrot.lane.b32.xlu0 %v473, 24
      %v1272 = vpop.permute.xlu0 %1271
      %1273 = vrot.lane.b32.xlu0 %v474, 24
      %v1274 = vpop.permute.xlu0 %1273
      %1339 = vrot.lane.b32.xlu0 %v475, 28
      %v1340 = vpop.permute.xlu0 %1339
      %1341 = vrot.lane.b32.xlu0 %v476, 28
      %v1342 = vpop.permute.xlu0 %1341
      %1343 = vrot.lane.b32.xlu0 %v477, 28
      %v1344 = vpop.permute.xlu0 %1343
      %1345 = vrot.lane.b32.xlu0 %v478, 28
      %v1346 = vpop.permute.xlu0 %1345
      %1347 = vrot.lane.b32.xlu0 %v479, 28
      %v1348 = vpop.permute.xlu0 %1347
      %1349 = vrot.lane.b32.xlu0 %v480, 28
      %v1350 = vpop.permute.xlu0 %1349
      %1351 = vrot.lane.b32.xlu0 %v481, 28
      %v1352 = vpop.permute.xlu0 %1351
      %1353 = vrot.lane.b32.xlu0 %v482, 28
      %v1354 = vpop.permute.xlu0 %1353
      %1355 = vrot.lane.b32.xlu0 %v483, 28
      %v1356 = vpop.permute.xlu0 %1355
      %1357 = vrot.lane.b32.xlu0 %v484, 28
      %v1358 = vpop.permute.xlu0 %1357
      %1359 = vrot.lane.b32.xlu0 %v485, 28
      %v1360 = vpop.permute.xlu0 %1359
      %1361 = vrot.lane.b32.xlu0 %v486, 28
      %v1362 = vpop.permute.xlu0 %1361
      %1363 = vrot.lane.b32.xlu0 %v487, 28
      %v1364 = vpop.permute.xlu0 %1363
      %1365 = vrot.lane.b32.xlu0 %v488, 28
      %v1366 = vpop.permute.xlu0 %1365
      %1367 = vrot.lane.b32.xlu0 %v489, 28
      %v1368 = vpop.permute.xlu0 %1367
      %1369 = vrot.lane.b32.xlu0 %v490, 28
      %v1370 = vpop.permute.xlu0 %1369
      %1371 = vrot.lane.b32.xlu0 %v491, 28
      %v1372 = vpop.permute.xlu0 %1371
      %1373 = vrot.lane.b32.xlu0 %v492, 28
      %v1374 = vpop.permute.xlu0 %1373
      %1375 = vrot.lane.b32.xlu0 %v493, 28
      %v1376 = vpop.permute.xlu0 %1375
      %1377 = vrot.lane.b32.xlu0 %v494, 28
      %v1378 = vpop.permute.xlu0 %1377
      %1379 = vrot.lane.b32.xlu0 %v495, 28
      %v1380 = vpop.permute.xlu0 %1379
      %1381 = vrot.lane.b32.xlu0 %v496, 28
      %v1382 = vpop.permute.xlu0 %1381
      %1383 = vrot.lane.b32.xlu0 %v497, 28
      %v1384 = vpop.permute.xlu0 %1383
      %1385 = vrot.lane.b32.xlu0 %v498, 28
      %v1386 = vpop.permute.xlu0 %1385
      %1387 = vrot.lane.b32.xlu0 %v499, 28
      %v1388 = vpop.permute.xlu0 %1387
      %1389 = vrot.lane.b32.xlu0 %v500, 28
      %v1390 = vpop.permute.xlu0 %1389
      %1391 = vrot.lane.b32.xlu0 %v501, 28
      %v1392 = vpop.permute.xlu0 %1391
      %1393 = vrot.lane.b32.xlu0 %v502, 28
      %v1394 = vpop.permute.xlu0 %1393
      %1395 = vrot.lane.b32.xlu0 %v503, 28
      %v1396 = vpop.permute.xlu0 %1395
      %1397 = vrot.lane.b32.xlu0 %v504, 28
      %v1398 = vpop.permute.xlu0 %1397
      %1399 = vrot.lane.b32.xlu0 %v505, 28
      %v1400 = vpop.permute.xlu0 %1399
      %1401 = vrot.lane.b32.xlu0 %v506, 28
      %v1402 = vpop.permute.xlu0 %1401
      %1467 = vrot.lane.b32.xlu0 %v507, 32
      %v1468 = vpop.permute.xlu0 %1467
      %1469 = vrot.lane.b32.xlu0 %v508, 32
      %v1470 = vpop.permute.xlu0 %1469
      %1471 = vrot.lane.b32.xlu0 %v509, 32
      %v1472 = vpop.permute.xlu0 %1471
      %1473 = vrot.lane.b32.xlu0 %v510, 32
      %v1474 = vpop.permute.xlu0 %1473
      %1475 = vrot.lane.b32.xlu0 %v511, 32
      %v1476 = vpop.permute.xlu0 %1475
      %1477 = vrot.lane.b32.xlu0 %v512, 32
      %v1478 = vpop.permute.xlu0 %1477
      %1479 = vrot.lane.b32.xlu0 %v513, 32
      %v1480 = vpop.permute.xlu0 %1479
      %1481 = vrot.lane.b32.xlu0 %v514, 32
      %v1482 = vpop.permute.xlu0 %1481
      %1483 = vrot.lane.b32.xlu0 %v515, 32
      %v1484 = vpop.permute.xlu0 %1483
      %1485 = vrot.lane.b32.xlu0 %v516, 32
      %v1486 = vpop.permute.xlu0 %1485
      %1487 = vrot.lane.b32.xlu0 %v517, 32
      %v1488 = vpop.permute.xlu0 %1487
      %1489 = vrot.lane.b32.xlu0 %v518, 32
      %v1490 = vpop.permute.xlu0 %1489
      %1491 = vrot.lane.b32.xlu0 %v519, 32
      %v1492 = vpop.permute.xlu0 %1491
      %1493 = vrot.lane.b32.xlu0 %v520, 32
      %v1494 = vpop.permute.xlu0 %1493
      %1495 = vrot.lane.b32.xlu0 %v521, 32
      %v1496 = vpop.permute.xlu0 %1495
      %1497 = vrot.lane.b32.xlu0 %v522, 32
      %v1498 = vpop.permute.xlu0 %1497
      %1499 = vrot.lane.b32.xlu0 %v523, 32
      %v1500 = vpop.permute.xlu0 %1499
      %1501 = vrot.lane.b32.xlu0 %v524, 32
      %v1502 = vpop.permute.xlu0 %1501
      %1503 = vrot.lane.b32.xlu0 %v525, 32
      %v1504 = vpop.permute.xlu0 %1503
      %1505 = vrot.lane.b32.xlu0 %v526, 32
      %v1506 = vpop.permute.xlu0 %1505
      %1507 = vrot.lane.b32.xlu0 %v527, 32
      %v1508 = vpop.permute.xlu0 %1507
      %1509 = vrot.lane.b32.xlu0 %v528, 32
      %v1510 = vpop.permute.xlu0 %1509
      %1511 = vrot.lane.b32.xlu0 %v529, 32
      %v1512 = vpop.permute.xlu0 %1511
      %1513 = vrot.lane.b32.xlu0 %v530, 32
      %v1514 = vpop.permute.xlu0 %1513
      %1515 = vrot.lane.b32.xlu0 %v531, 32
      %v1516 = vpop.permute.xlu0 %1515
      %1517 = vrot.lane.b32.xlu0 %v532, 32
      %v1518 = vpop.permute.xlu0 %1517
      %1519 = vrot.lane.b32.xlu0 %v533, 32
      %v1520 = vpop.permute.xlu0 %1519
      %1521 = vrot.lane.b32.xlu0 %v534, 32
      %v1522 = vpop.permute.xlu0 %1521
      %1523 = vrot.lane.b32.xlu0 %v535, 32
      %v1524 = vpop.permute.xlu0 %1523
      %1525 = vrot.lane.b32.xlu0 %v536, 32
      %v1526 = vpop.permute.xlu0 %1525
      %1527 = vrot.lane.b32.xlu0 %v537, 32
      %v1528 = vpop.permute.xlu0 %1527
      %1529 = vrot.lane.b32.xlu0 %v538, 32
      %v1530 = vpop.permute.xlu0 %1529
      %vm1563 = vcmask 31744
      %v1564 = vsel %vm1563, %v245, %v572
      %v1565 = vsel %vm1563, %v246, %v574
      %v1566 = vsel %vm1563, %v247, %v576
      %v1567 = vsel %vm1563, %v248, %v578
      %v1568 = vsel %vm1563, %v249, %v580
      %v1569 = vsel %vm1563, %v250, %v582
      %v1570 = vsel %vm1563, %v251, %v584
      %v1571 = vsel %vm1563, %v252, %v586
      %v1572 = vsel %vm1563, %v253, %v588
      %v1573 = vsel %vm1563, %v254, %v590
      %v1574 = vsel %vm1563, %v255, %v592
      %v1575 = vsel %vm1563, %v256, %v594
      %v1576 = vsel %vm1563, %v257, %v596
      %v1577 = vsel %vm1563, %v258, %v598
      %v1578 = vsel %vm1563, %v259, %v600
      %v1579 = vsel %vm1563, %v260, %v602
      %v1580 = vsel %vm1563, %v261, %v604
      %v1581 = vsel %vm1563, %v262, %v606
      %v1582 = vsel %vm1563, %v263, %v608
      %v1583 = vsel %vm1563, %v264, %v610
      %v1584 = vsel %vm1563, %v265, %v612
      %v1585 = vsel %vm1563, %v266, %v614
      %v1586 = vsel %vm1563, %v267, %v616
      %v1587 = vsel %vm1563, %v268, %v618
      %v1588 = vsel %vm1563, %v269, %v620
      %v1589 = vsel %vm1563, %v270, %v622
      %v1590 = vsel %vm1563, %v271, %v624
      %v1591 = vsel %vm1563, %v272, %v626
      %v1592 = vsel %vm1563, %v273, %v628
      %v1593 = vsel %vm1563, %v274, %v630
      %v1594 = vsel %vm1563, %v275, %v632
      %v1595 = vsel %vm1563, %v276, %v634
      %vm1596 = vcmask 64512
      %v1597 = vsel %vm1596, %v1564, %v700
      %v1598 = vsel %vm1596, %v1565, %v702
      %v1599 = vsel %vm1596, %v1566, %v704
      %v1600 = vsel %vm1596, %v1567, %v706
      %v1601 = vsel %vm1596, %v1568, %v708
      %v1602 = vsel %vm1596, %v1569, %v710
      %v1603 = vsel %vm1596, %v1570, %v712
      %v1604 = vsel %vm1596, %v1571, %v714
      %v1605 = vsel %vm1596, %v1572, %v716
      %v1606 = vsel %vm1596, %v1573, %v718
      %v1607 = vsel %vm1596, %v1574, %v720
      %v1608 = vsel %vm1596, %v1575, %v722
      %v1609 = vsel %vm1596, %v1576, %v724
      %v1610 = vsel %vm1596, %v1577, %v726
      %v1611 = vsel %vm1596, %v1578, %v728
      %v1612 = vsel %vm1596, %v1579, %v730
      %v1613 = vsel %vm1596, %v1580, %v732
      %v1614 = vsel %vm1596, %v1581, %v734
      %v1615 = vsel %vm1596, %v1582, %v736
      %v1616 = vsel %vm1596, %v1583, %v738
      %v1617 = vsel %vm1596, %v1584, %v740
      %v1618 = vsel %vm1596, %v1585, %v742
      %v1619 = vsel %vm1596, %v1586, %v744
      %v1620 = vsel %vm1596, %v1587, %v746
      %v1621 = vsel %vm1596, %v1588, %v748
      %v1622 = vsel %vm1596, %v1589, %v750
      %v1623 = vsel %vm1596, %v1590, %v752
      %v1624 = vsel %vm1596, %v1591, %v754
      %v1625 = vsel %vm1596, %v1592, %v756
      %v1626 = vsel %vm1596, %v1593, %v758
      %v1627 = vsel %vm1596, %v1594, %v760
      %v1628 = vsel %vm1596, %v1595, %v762
      %vm1629 = vcmask 97280
      %v1630 = vsel %vm1629, %v1597, %v828
      %v1631 = vsel %vm1629, %v1598, %v830
      %v1632 = vsel %vm1629, %v1599, %v832
      %v1633 = vsel %vm1629, %v1600, %v834
      %v1634 = vsel %vm1629, %v1601, %v836
      %v1635 = vsel %vm1629, %v1602, %v838
      %v1636 = vsel %vm1629, %v1603, %v840
      %v1637 = vsel %vm1629, %v1604, %v842
      %v1638 = vsel %vm1629, %v1605, %v844
      %v1639 = vsel %vm1629, %v1606, %v846
      %v1640 = vsel %vm1629, %v1607, %v848
      %v1641 = vsel %vm1629, %v1608, %v850
      %v1642 = vsel %vm1629, %v1609, %v852
      %v1643 = vsel %vm1629, %v1610, %v854
      %v1644 = vsel %vm1629, %v1611, %v856
      %v1645 = vsel %vm1629, %v1612, %v858
      %v1646 = vsel %vm1629, %v1613, %v860
      %v1647 = vsel %vm1629, %v1614, %v862
      %v1648 = vsel %vm1629, %v1615, %v864
      %v1649 = vsel %vm1629, %v1616, %v866
      %v1650 = vsel %vm1629, %v1617, %v868
      %v1651 = vsel %vm1629, %v1618, %v870
      %v1652 = vsel %vm1629, %v1619, %v872
      %v1653 = vsel %vm1629, %v1620, %v874
      %v1654 = vsel %vm1629, %v1621, %v876
      %v1655 = vsel %vm1629, %v1622, %v878
      %v1656 = vsel %vm1629, %v1623, %v880
      %v1657 = vsel %vm1629, %v1624, %v882
      %v1658 = vsel %vm1629, %v1625, %v884
      %v1659 = vsel %vm1629, %v1626, %v886
      %v1660 = vsel %vm1629, %v1627, %v888
      %v1661 = vsel %vm1629, %v1628, %v890
      %vm1662 = vcmask 130048
      %v1663 = vsel %vm1662, %v1630, %v956
      %v1664 = vsel %vm1662, %v1631, %v958
      %v1665 = vsel %vm1662, %v1632, %v960
      %v1666 = vsel %vm1662, %v1633, %v962
      %v1667 = vsel %vm1662, %v1634, %v964
      %v1668 = vsel %vm1662, %v1635, %v966
      %v1669 = vsel %vm1662, %v1636, %v968
      %v1670 = vsel %vm1662, %v1637, %v970
      %v1671 = vsel %vm1662, %v1638, %v972
      %v1672 = vsel %vm1662, %v1639, %v974
      %v1673 = vsel %vm1662, %v1640, %v976
      %v1674 = vsel %vm1662, %v1641, %v978
      %v1675 = vsel %vm1662, %v1642, %v980
      %v1676 = vsel %vm1662, %v1643, %v982
      %v1677 = vsel %vm1662, %v1644, %v984
      %v1678 = vsel %vm1662, %v1645, %v986
      %v1679 = vsel %vm1662, %v1646, %v988
      %v1680 = vsel %vm1662, %v1647, %v990
      %v1681 = vsel %vm1662, %v1648, %v992
      %v1682 = vsel %vm1662, %v1649, %v994
      %v1683 = vsel %vm1662, %v1650, %v996
      %v1684 = vsel %vm1662, %v1651, %v998
      %v1685 = vsel %vm1662, %v1652, %v1000
      %v1686 = vsel %vm1662, %v1653, %v1002
      %v1687 = vsel %vm1662, %v1654, %v1004
      %v1688 = vsel %vm1662, %v1655, %v1006
      %v1689 = vsel %vm1662, %v1656, %v1008
      %v1690 = vsel %vm1662, %v1657, %v1010
      %v1691 = vsel %vm1662, %v1658, %v1012
      %v1692 = vsel %vm1662, %v1659, %v1014
      %v1693 = vsel %vm1662, %v1660, %v1016
      %v1694 = vsel %vm1662, %v1661, %v1018
      %vm1695 = vcmask 162816
      %v1696 = vsel %vm1695, %v1663, %v1084
      %v1697 = vsel %vm1695, %v1664, %v1086
      %v1698 = vsel %vm1695, %v1665, %v1088
      %v1699 = vsel %vm1695, %v1666, %v1090
      %v1700 = vsel %vm1695, %v1667, %v1092
      %v1701 = vsel %vm1695, %v1668, %v1094
      %v1702 = vsel %vm1695, %v1669, %v1096
      %v1703 = vsel %vm1695, %v1670, %v1098
      %v1704 = vsel %vm1695, %v1671, %v1100
      %v1705 = vsel %vm1695, %v1672, %v1102
      %v1706 = vsel %vm1695, %v1673, %v1104
      %v1707 = vsel %vm1695, %v1674, %v1106
      %v1708 = vsel %vm1695, %v1675, %v1108
      %v1709 = vsel %vm1695, %v1676, %v1110
      %v1710 = vsel %vm1695, %v1677, %v1112
      %v1711 = vsel %vm1695, %v1678, %v1114
      %v1712 = vsel %vm1695, %v1679, %v1116
      %v1713 = vsel %vm1695, %v1680, %v1118
      %v1714 = vsel %vm1695, %v1681, %v1120
      %v1715 = vsel %vm1695, %v1682, %v1122
      %v1716 = vsel %vm1695, %v1683, %v1124
      %v1717 = vsel %vm1695, %v1684, %v1126
      %v1718 = vsel %vm1695, %v1685, %v1128
      %v1719 = vsel %vm1695, %v1686, %v1130
      %v1720 = vsel %vm1695, %v1687, %v1132
      %v1721 = vsel %vm1695, %v1688, %v1134
      %v1722 = vsel %vm1695, %v1689, %v1136
      %v1723 = vsel %vm1695, %v1690, %v1138
      %v1724 = vsel %vm1695, %v1691, %v1140
      %v1725 = vsel %vm1695, %v1692, %v1142
      %v1726 = vsel %vm1695, %v1693, %v1144
      %v1727 = vsel %vm1695, %v1694, %v1146
      %vm1728 = vcmask 195584
      %v1729 = vsel %vm1728, %v1696, %v1212
      %v1730 = vsel %vm1728, %v1697, %v1214
      %v1731 = vsel %vm1728, %v1698, %v1216
      %v1732 = vsel %vm1728, %v1699, %v1218
      %v1733 = vsel %vm1728, %v1700, %v1220
      %v1734 = vsel %vm1728, %v1701, %v1222
      %v1735 = vsel %vm1728, %v1702, %v1224
      %v1736 = vsel %vm1728, %v1703, %v1226
      %v1737 = vsel %vm1728, %v1704, %v1228
      %v1738 = vsel %vm1728, %v1705, %v1230
      %v1739 = vsel %vm1728, %v1706, %v1232
      %v1740 = vsel %vm1728, %v1707, %v1234
      %v1741 = vsel %vm1728, %v1708, %v1236
      %v1742 = vsel %vm1728, %v1709, %v1238
      %v1743 = vsel %vm1728, %v1710, %v1240
      %v1744 = vsel %vm1728, %v1711, %v1242
      %v1745 = vsel %vm1728, %v1712, %v1244
      %v1746 = vsel %vm1728, %v1713, %v1246
      %v1747 = vsel %vm1728, %v1714, %v1248
      %v1748 = vsel %vm1728, %v1715, %v1250
      %v1749 = vsel %vm1728, %v1716, %v1252
      %v1750 = vsel %vm1728, %v1717, %v1254
      %v1751 = vsel %vm1728, %v1718, %v1256
      %v1752 = vsel %vm1728, %v1719, %v1258
      %v1753 = vsel %vm1728, %v1720, %v1260
      %v1754 = vsel %vm1728, %v1721, %v1262
      %v1755 = vsel %vm1728, %v1722, %v1264
      %v1756 = vsel %vm1728, %v1723, %v1266
      %v1757 = vsel %vm1728, %v1724, %v1268
      %v1758 = vsel %vm1728, %v1725, %v1270
      %v1759 = vsel %vm1728, %v1726, %v1272
      %v1760 = vsel %vm1728, %v1727, %v1274
      %vm1761 = vcmask 228352
      %v1762 = vsel %vm1761, %v1729, %v1340
      %v1763 = vsel %vm1761, %v1730, %v1342
      %v1764 = vsel %vm1761, %v1731, %v1344
      %v1765 = vsel %vm1761, %v1732, %v1346
      %v1766 = vsel %vm1761, %v1733, %v1348
      %v1767 = vsel %vm1761, %v1734, %v1350
      %v1768 = vsel %vm1761, %v1735, %v1352
      %v1769 = vsel %vm1761, %v1736, %v1354
      %v1770 = vsel %vm1761, %v1737, %v1356
      %v1771 = vsel %vm1761, %v1738, %v1358
      %v1772 = vsel %vm1761, %v1739, %v1360
      %v1773 = vsel %vm1761, %v1740, %v1362
      %v1774 = vsel %vm1761, %v1741, %v1364
      %v1775 = vsel %vm1761, %v1742, %v1366
      %v1776 = vsel %vm1761, %v1743, %v1368
      %v1777 = vsel %vm1761, %v1744, %v1370
      %v1778 = vsel %vm1761, %v1745, %v1372
      %v1779 = vsel %vm1761, %v1746, %v1374
      %v1780 = vsel %vm1761, %v1747, %v1376
      %v1781 = vsel %vm1761, %v1748, %v1378
      %v1782 = vsel %vm1761, %v1749, %v1380
      %v1783 = vsel %vm1761, %v1750, %v1382
      %v1784 = vsel %vm1761, %v1751, %v1384
      %v1785 = vsel %vm1761, %v1752, %v1386
      %v1786 = vsel %vm1761, %v1753, %v1388
      %v1787 = vsel %vm1761, %v1754, %v1390
      %v1788 = vsel %vm1761, %v1755, %v1392
      %v1789 = vsel %vm1761, %v1756, %v1394
      %v1790 = vsel %vm1761, %v1757, %v1396
      %v1791 = vsel %vm1761, %v1758, %v1398
      %v1792 = vsel %vm1761, %v1759, %v1400
      %v1793 = vsel %vm1761, %v1760, %v1402
      %vm1794 = vcmask 261120
      %v1795 = vsel %vm1794, %v1762, %v1468
      %v1796 = vsel %vm1794, %v1763, %v1470
      %v1797 = vsel %vm1794, %v1764, %v1472
      %v1798 = vsel %vm1794, %v1765, %v1474
      %v1799 = vsel %vm1794, %v1766, %v1476
      %v1800 = vsel %vm1794, %v1767, %v1478
      %v1801 = vsel %vm1794, %v1768, %v1480
      %v1802 = vsel %vm1794, %v1769, %v1482
      %v1803 = vsel %vm1794, %v1770, %v1484
      %v1804 = vsel %vm1794, %v1771, %v1486
      %v1805 = vsel %vm1794, %v1772, %v1488
      %v1806 = vsel %vm1794, %v1773, %v1490
      %v1807 = vsel %vm1794, %v1774, %v1492
      %v1808 = vsel %vm1794, %v1775, %v1494
      %v1809 = vsel %vm1794, %v1776, %v1496
      %v1810 = vsel %vm1794, %v1777, %v1498
      %v1811 = vsel %vm1794, %v1778, %v1500
      %v1812 = vsel %vm1794, %v1779, %v1502
      %v1813 = vsel %vm1794, %v1780, %v1504
      %v1814 = vsel %vm1794, %v1781, %v1506
      %v1815 = vsel %vm1794, %v1782, %v1508
      %v1816 = vsel %vm1794, %v1783, %v1510
      %v1817 = vsel %vm1794, %v1784, %v1512
      %v1818 = vsel %vm1794, %v1785, %v1514
      %v1819 = vsel %vm1794, %v1786, %v1516
      %v1820 = vsel %vm1794, %v1787, %v1518
      %v1821 = vsel %vm1794, %v1788, %v1520
      %v1822 = vsel %vm1794, %v1789, %v1522
      %v1823 = vsel %vm1794, %v1790, %v1524
      %v1824 = vsel %vm1794, %v1791, %v1526
      %v1825 = vsel %vm1794, %v1792, %v1528
      %v1826 = vsel %vm1794, %v1793, %v1530
      %v1827 = vld [vmem:[%s1] sm:$0xff]
      %v1828 = vld [vmem:[%s1 + $0x8] sm:$0xff]
      %v1829 = vld [vmem:[%s1 + $0x10] sm:$0xff]
      %v1830 = vld [vmem:[%s1 + $0x18] sm:$0xff]
      %v1831 = vld [vmem:[%s1 + $0x20] sm:$0xf]
      %v1832 = vld [vmem:[%s2] sm:$0x1]
      %v1834 = vperm.slane %v1832, 0
      %vm1836 = vcmask 293888
      %v1838 = vsel %vm1836, %v1795, 0
      %v1841 = vsel %vm1836, %v1796, 0
      %v1844 = vsel %vm1836, %v1797, 0
      %v1847 = vsel %vm1836, %v1798, 0
      %v1850 = vsel %vm1836, %v1799, 0
      %v1853 = vsel %vm1836, %v1800, 0
      %v1856 = vsel %vm1836, %v1801, 0
      %v1859 = vsel %vm1836, %v1802, 0
      %v1862 = vsel %vm1836, %v1803, 0
      %v1865 = vsel %vm1836, %v1804, 0
      %v1868 = vsel %vm1836, %v1805, 0
      %v1871 = vsel %vm1836, %v1806, 0
      %v1874 = vsel %vm1836, %v1807, 0
      %v1877 = vsel %vm1836, %v1808, 0
      %v1880 = vsel %vm1836, %v1809, 0
      %v1883 = vsel %vm1836, %v1810, 0
      %v1886 = vsel %vm1836, %v1811, 0
      %v1889 = vsel %vm1836, %v1812, 0
      %v1892 = vsel %vm1836, %v1813, 0
      %v1895 = vsel %vm1836, %v1814, 0
      %v1898 = vsel %vm1836, %v1815, 0
      %v1901 = vsel %vm1836, %v1816, 0
      %v1904 = vsel %vm1836, %v1817, 0
      %v1907 = vsel %vm1836, %v1818, 0
      %v1910 = vsel %vm1836, %v1819, 0
      %v1913 = vsel %vm1836, %v1820, 0
      %v1916 = vsel %vm1836, %v1821, 0
      %v1919 = vsel %vm1836, %v1822, 0
      %v1922 = vsel %vm1836, %v1823, 0
      %v1925 = vsel %vm1836, %v1824, 0
      %v1928 = vsel %vm1836, %v1825, 0
      %v1931 = vsel %vm1836, %v1826, 0
      %vm1933 = vcmask 1043456
      %v1935 = vsel %vm1933, %v1831, 0
      %1937 = vmatpush.msra.mxu0 0.0
      %1938 = vmatpush.msra.mxu0 0.0
      %1939 = vmatpush.msra.mxu0 0.0
      %1940 = vmatpush.msra.mxu0 0.0
      %1941 = vmatpush.msra.mxu0 0.0
      %1942 = vmatpush.msra.mxu0 0.0
      %1943 = vmatpush.msra.mxu0 0.0
      %1944 = vmatpush.msra.mxu0 0.0
      %1945 = vmatpush.msra.mxu0 0.0
      %1946 = vmatpush.msra.mxu0 0.0
      %1947 = vmatpush.msra.mxu0 0.0
      %1948 = vmatpush.msra.mxu0 %v1935
      %1949 = vmatpush.msra.mxu0 %v1830
      %1950 = vmatpush.msra.mxu0 %v1829
      %1951 = vmatpush.msra.mxu0 %v1828
      %1952 = vmatpush.msra.mxu0 %v1827
      %1953 = vmatmul.f32.gmra.mxu0 %v1838
      %v1954 = vpop.f32.mrf.mxu0
      %v1955 = vadd.f32 %v1834, %v1954
      %1956 = vmatmul.f32.gmra.mxu0 %v1841
      %v1957 = vpop.f32.mrf.mxu0
      %v1958 = vadd.f32 %v1834, %v1957
      %1959 = vmatmul.f32.gmra.mxu0 %v1844
      %v1960 = vpop.f32.mrf.mxu0
      %v1961 = vadd.f32 %v1834, %v1960
      %1962 = vmatmul.f32.gmra.mxu0 %v1847
      %v1963 = vpop.f32.mrf.mxu0
      %v1964 = vadd.f32 %v1834, %v1963
      %1965 = vmatmul.f32.gmra.mxu0 %v1850
      %v1966 = vpop.f32.mrf.mxu0
      %v1967 = vadd.f32 %v1834, %v1966
      %1968 = vmatmul.f32.gmra.mxu0 %v1853
      %v1969 = vpop.f32.mrf.mxu0
      %v1970 = vadd.f32 %v1834, %v1969
      %1971 = vmatmul.f32.gmra.mxu0 %v1856
      %v1972 = vpop.f32.mrf.mxu0
      %v1973 = vadd.f32 %v1834, %v1972
      %1974 = vmatmul.f32.gmra.mxu0 %v1859
      %v1975 = vpop.f32.mrf.mxu0
      %v1976 = vadd.f32 %v1834, %v1975
      %1977 = vmatmul.f32.gmra.mxu0 %v1862
      %v1978 = vpop.f32.mrf.mxu0
      %v1979 = vadd.f32 %v1834, %v1978
      %1980 = vmatmul.f32.gmra.mxu0 %v1865
      %v1981 = vpop.f32.mrf.mxu0
      %v1982 = vadd.f32 %v1834, %v1981
      %1983 = vmatmul.f32.gmra.mxu0 %v1868
      %v1984 = vpop.f32.mrf.mxu0
      %v1985 = vadd.f32 %v1834, %v1984
      %1986 = vmatmul.f32.gmra.mxu0 %v1871
      %v1987 = vpop.f32.mrf.mxu0
      %v1988 = vadd.f32 %v1834, %v1987
      %1989 = vmatmul.f32.gmra.mxu0 %v1874
      %v1990 = vpop.f32.mrf.mxu0
      %v1991 = vadd.f32 %v1834, %v1990
      %1992 = vmatmul.f32.gmra.mxu0 %v1877
      %v1993 = vpop.f32.mrf.mxu0
      %v1994 = vadd.f32 %v1834, %v1993
      %1995 = vmatmul.f32.gmra.mxu0 %v1880
      %v1996 = vpop.f32.mrf.mxu0
      %v1997 = vadd.f32 %v1834, %v1996
      %1998 = vmatmul.f32.gmra.mxu0 %v1883
      %v1999 = vpop.f32.mrf.mxu0
      %v2000 = vadd.f32 %v1834, %v1999
      %2001 = vmatmul.f32.gmra.mxu0 %v1886
      %v2002 = vpop.f32.mrf.mxu0
      %v2003 = vadd.f32 %v1834, %v2002
      %2004 = vmatmul.f32.gmra.mxu0 %v1889
      %v2005 = vpop.f32.mrf.mxu0
      %v2006 = vadd.f32 %v1834, %v2005
      %2007 = vmatmul.f32.gmra.mxu0 %v1892
      %v2008 = vpop.f32.mrf.mxu0
      %v2009 = vadd.f32 %v1834, %v2008
      %2010 = vmatmul.f32.gmra.mxu0 %v1895
      %v2011 = vpop.f32.mrf.mxu0
      %v2012 = vadd.f32 %v1834, %v2011
      %2013 = vmatmul.f32.gmra.mxu0 %v1898
      %v2014 = vpop.f32.mrf.mxu0
      %v2015 = vadd.f32 %v1834, %v2014
      %2016 = vmatmul.f32.gmra.mxu0 %v1901
      %v2017 = vpop.f32.mrf.mxu0
      %v2018 = vadd.f32 %v1834, %v2017
      %2019 = vmatmul.f32.gmra.mxu0 %v1904
      %v2020 = vpop.f32.mrf.mxu0
      %v2021 = vadd.f32 %v1834, %v2020
      %2022 = vmatmul.f32.gmra.mxu0 %v1907
      %v2023 = vpop.f32.mrf.mxu0
      %v2024 = vadd.f32 %v1834, %v2023
      %2025 = vmatmul.f32.gmra.mxu0 %v1910
      %v2026 = vpop.f32.mrf.mxu0
      %v2027 = vadd.f32 %v1834, %v2026
      %2028 = vmatmul.f32.gmra.mxu0 %v1913
      %v2029 = vpop.f32.mrf.mxu0
      %v2030 = vadd.f32 %v1834, %v2029
      %2031 = vmatmul.f32.gmra.mxu0 %v1916
      %v2032 = vpop.f32.mrf.mxu0
      %v2033 = vadd.f32 %v1834, %v2032
      %2034 = vmatmul.f32.gmra.mxu0 %v1919
      %v2035 = vpop.f32.mrf.mxu0
      %v2036 = vadd.f32 %v1834, %v2035
      %2037 = vmatmul.f32.gmra.mxu0 %v1922
      %v2038 = vpop.f32.mrf.mxu0
      %v2039 = vadd.f32 %v1834, %v2038
      %2040 = vmatmul.f32.gmra.mxu0 %v1925
      %v2041 = vpop.f32.mrf.mxu0
      %v2042 = vadd.f32 %v1834, %v2041
      %2043 = vmatmul.f32.gmra.mxu0 %v1928
      %v2044 = vpop.f32.mrf.mxu0
      %v2045 = vadd.f32 %v1834, %v2044
      %2046 = vmatmul.f32.gmra.mxu0 %v1931
      %v2047 = vpop.f32.mrf.mxu0
      %v2048 = vadd.f32 %v1834, %v2047
      %2049 = vdwg.mxu0
      %2050 = vst.msk [vmem:[%s233] sm:$0xff] %vm1794, %v1955
      %2051 = vst.msk [vmem:[%s233 + $0x8] sm:$0xff] %vm1794, %v1958
      %2052 = vst.msk [vmem:[%s233 + $0x10] sm:$0xff] %vm1794, %v1961
      %2053 = vst.msk [vmem:[%s233 + $0x18] sm:$0xff] %vm1794, %v1964
      %2054 = vst.msk [vmem:[%s233 + $0x20] sm:$0xff] %vm1794, %v1967
      %2055 = vst.msk [vmem:[%s233 + $0x28] sm:$0xff] %vm1794, %v1970
      %2056 = vst.msk [vmem:[%s233 + $0x30] sm:$0xff] %vm1794, %v1973
      %2057 = vst.msk [vmem:[%s233 + $0x38] sm:$0xff] %vm1794, %v1976
      %2058 = vst.msk [vmem:[%s233 + $0x40] sm:$0xff] %vm1794, %v1979
      %2059 = vst.msk [vmem:[%s233 + $0x48] sm:$0xff] %vm1794, %v1982
      %2060 = vst.msk [vmem:[%s233 + $0x50] sm:$0xff] %vm1794, %v1985
      %2061 = vst.msk [vmem:[%s233 + $0x58] sm:$0xff] %vm1794, %v1988
      %2062 = vst.msk [vmem:[%s233 + $0x60] sm:$0xff] %vm1794, %v1991
      %2063 = vst.msk [vmem:[%s233 + $0x68] sm:$0xff] %vm1794, %v1994
      %2064 = vst.msk [vmem:[%s233 + $0x70] sm:$0xff] %vm1794, %v1997
      %2065 = vst.msk [vmem:[%s233 + $0x78] sm:$0xff] %vm1794, %v2000
      %2066 = vst.msk [vmem:[%s233 + $0x80] sm:$0xff] %vm1794, %v2003
      %2067 = vst.msk [vmem:[%s233 + $0x88] sm:$0xff] %vm1794, %v2006
      %2068 = vst.msk [vmem:[%s233 + $0x90] sm:$0xff] %vm1794, %v2009
      %2069 = vst.msk [vmem:[%s233 + $0x98] sm:$0xff] %vm1794, %v2012
      %2070 = vst.msk [vmem:[%s233 + $0xa0] sm:$0xff] %vm1794, %v2015
      %2071 = vst.msk [vmem:[%s233 + $0xa8] sm:$0xff] %vm1794, %v2018
      %2072 = vst.msk [vmem:[%s233 + $0xb0] sm:$0xff] %vm1794, %v2021
      %2073 = vst.msk [vmem:[%s233 + $0xb8] sm:$0xff] %vm1794, %v2024
      %2074 = vst.msk [vmem:[%s233 + $0xc0] sm:$0xff] %vm1794, %v2027
      %2075 = vst.msk [vmem:[%s233 + $0xc8] sm:$0xff] %vm1794, %v2030
      %2076 = vst.msk [vmem:[%s233 + $0xd0] sm:$0xff] %vm1794, %v2033
      %2077 = vst.msk [vmem:[%s233 + $0xd8] sm:$0xff] %vm1794, %v2036
      %2078 = vst.msk [vmem:[%s233 + $0xe0] sm:$0xff] %vm1794, %v2039
      %2079 = vst.msk [vmem:[%s233 + $0xe8] sm:$0xff] %vm1794, %v2042
      %2080 = vst.msk [vmem:[%s233 + $0xf0] sm:$0xff] %vm1794, %v2045
      %2081 = vst.msk [vmem:[%s233 + $0xf8] sm:$0xff] %vm1794, %v2048
      %v2082 = vsel %vm1794, %v1955, 0.0
      %v2083 = vsel %vm1794, %v1958, 0.0
      %v2084 = vadd.f32 %v2082, %v2083
      %v2085 = vsel %vm1794, %v1961, 0.0
      %v2086 = vadd.f32 %v2084, %v2085
      %v2087 = vsel %vm1794, %v1964, 0.0
      %v2088 = vadd.f32 %v2086, %v2087
      %v2089 = vsel %vm1794, %v1967, 0.0
      %v2090 = vadd.f32 %v2088, %v2089
      %v2091 = vsel %vm1794, %v1970, 0.0
      %v2092 = vadd.f32 %v2090, %v2091
      %v2093 = vsel %vm1794, %v1973, 0.0
      %v2094 = vadd.f32 %v2092, %v2093
      %v2095 = vsel %vm1794, %v1976, 0.0
      %v2096 = vadd.f32 %v2094, %v2095
      %v2097 = vsel %vm1794, %v1979, 0.0
      %v2098 = vadd.f32 %v2096, %v2097
      %v2099 = vsel %vm1794, %v1982, 0.0
      %v2100 = vadd.f32 %v2098, %v2099
      %v2101 = vsel %vm1794, %v1985, 0.0
      %v2102 = vadd.f32 %v2100, %v2101
      %v2103 = vsel %vm1794, %v1988, 0.0
      %v2104 = vadd.f32 %v2102, %v2103
      %v2105 = vsel %vm1794, %v1991, 0.0
      %v2106 = vadd.f32 %v2104, %v2105
      %v2107 = vsel %vm1794, %v1994, 0.0
      %v2108 = vadd.f32 %v2106, %v2107
      %v2109 = vsel %vm1794, %v1997, 0.0
      %v2110 = vadd.f32 %v2108, %v2109
      %v2111 = vsel %vm1794, %v2000, 0.0
      %v2112 = vadd.f32 %v2110, %v2111
      %v2113 = vsel %vm1794, %v2003, 0.0
      %v2114 = vadd.f32 %v2112, %v2113
      %v2115 = vsel %vm1794, %v2006, 0.0
      %v2116 = vadd.f32 %v2114, %v2115
      %v2117 = vsel %vm1794, %v2009, 0.0
      %v2118 = vadd.f32 %v2116, %v2117
      %v2119 = vsel %vm1794, %v2012, 0.0
      %v2120 = vadd.f32 %v2118, %v2119
      %v2121 = vsel %vm1794, %v2015, 0.0
      %v2122 = vadd.f32 %v2120, %v2121
      %v2123 = vsel %vm1794, %v2018, 0.0
      %v2124 = vadd.f32 %v2122, %v2123
      %v2125 = vsel %vm1794, %v2021, 0.0
      %v2126 = vadd.f32 %v2124, %v2125
      %v2127 = vsel %vm1794, %v2024, 0.0
      %v2128 = vadd.f32 %v2126, %v2127
      %v2129 = vsel %vm1794, %v2027, 0.0
      %v2130 = vadd.f32 %v2128, %v2129
      %v2131 = vsel %vm1794, %v2030, 0.0
      %v2132 = vadd.f32 %v2130, %v2131
      %v2133 = vsel %vm1794, %v2033, 0.0
      %v2134 = vadd.f32 %v2132, %v2133
      %v2135 = vsel %vm1794, %v2036, 0.0
      %v2136 = vadd.f32 %v2134, %v2135
      %v2137 = vsel %vm1794, %v2039, 0.0
      %v2138 = vadd.f32 %v2136, %v2137
      %v2139 = vsel %vm1794, %v2042, 0.0
      %v2140 = vadd.f32 %v2138, %v2139
      %v2141 = vsel %vm1794, %v2045, 0.0
      %v2142 = vadd.f32 %v2140, %v2141
      %v2143 = vsel %vm1794, %v2048, 0.0
      %v2144 = vadd.f32 %v2142, %v2143
      %v2145 = vrot.slane %v2144, 4
      %v2146 = vadd.f32 %v2144, %v2145
      %v2147 = vrot.slane %v2146, 2
      %v2148 = vadd.f32 %v2146, %v2147
      %v2149 = vrot.slane %v2148, 1
      %v2150 = vadd.f32 %v2148, %v2149
      %v2151 = vmul.f32 %v1955, %v1955
      %v2152 = vmul.f32 %v1958, %v1958
      %v2153 = vmul.f32 %v1961, %v1961
      %v2154 = vmul.f32 %v1964, %v1964
      %v2155 = vmul.f32 %v1967, %v1967
      %v2156 = vmul.f32 %v1970, %v1970
      %v2157 = vmul.f32 %v1973, %v1973
      %v2158 = vmul.f32 %v1976, %v1976
      %v2159 = vmul.f32 %v1979, %v1979
      %v2160 = vmul.f32 %v1982, %v1982
      %v2161 = vmul.f32 %v1985, %v1985
      %v2162 = vmul.f32 %v1988, %v1988
      %v2163 = vmul.f32 %v1991, %v1991
      %v2164 = vmul.f32 %v1994, %v1994
      %v2165 = vmul.f32 %v1997, %v1997
      %v2166 = vmul.f32 %v2000, %v2000
      %v2167 = vmul.f32 %v2003, %v2003
      %v2168 = vmul.f32 %v2006, %v2006
      %v2169 = vmul.f32 %v2009, %v2009
      %v2170 = vmul.f32 %v2012, %v2012
      %v2171 = vmul.f32 %v2015, %v2015
      %v2172 = vmul.f32 %v2018, %v2018
      %v2173 = vmul.f32 %v2021, %v2021
      %v2174 = vmul.f32 %v2024, %v2024
      %v2175 = vmul.f32 %v2027, %v2027
      %v2176 = vmul.f32 %v2030, %v2030
      %v2177 = vmul.f32 %v2033, %v2033
      %v2178 = vmul.f32 %v2036, %v2036
      %v2179 = vmul.f32 %v2039, %v2039
      %v2180 = vmul.f32 %v2042, %v2042
      %v2181 = vmul.f32 %v2045, %v2045
      %v2182 = vmul.f32 %v2048, %v2048
      %v2183 = vsel %vm1794, %v2151, 0.0
      %v2184 = vsel %vm1794, %v2152, 0.0
      %v2185 = vadd.f32 %v2183, %v2184
      %v2186 = vsel %vm1794, %v2153, 0.0
      %v2187 = vadd.f32 %v2185, %v2186
      %v2188 = vsel %vm1794, %v2154, 0.0
      %v2189 = vadd.f32 %v2187, %v2188
      %v2190 = vsel %vm1794, %v2155, 0.0
      %v2191 = vadd.f32 %v2189, %v2190
      %v2192 = vsel %vm1794, %v2156, 0.0
      %v2193 = vadd.f32 %v2191, %v2192
      %v2194 = vsel %vm1794, %v2157, 0.0
      %v2195 = vadd.f32 %v2193, %v2194
      %v2196 = vsel %vm1794, %v2158, 0.0
      %v2197 = vadd.f32 %v2195, %v2196
      %v2198 = vsel %vm1794, %v2159, 0.0
      %v2199 = vadd.f32 %v2197, %v2198
      %v2200 = vsel %vm1794, %v2160, 0.0
      %v2201 = vadd.f32 %v2199, %v2200
      %v2202 = vsel %vm1794, %v2161, 0.0
      %v2203 = vadd.f32 %v2201, %v2202
      %v2204 = vsel %vm1794, %v2162, 0.0
      %v2205 = vadd.f32 %v2203, %v2204
      %v2206 = vsel %vm1794, %v2163, 0.0
      %v2207 = vadd.f32 %v2205, %v2206
      %v2208 = vsel %vm1794, %v2164, 0.0
      %v2209 = vadd.f32 %v2207, %v2208
      %v2210 = vsel %vm1794, %v2165, 0.0
      %v2211 = vadd.f32 %v2209, %v2210
      %v2212 = vsel %vm1794, %v2166, 0.0
      %v2213 = vadd.f32 %v2211, %v2212
      %v2214 = vsel %vm1794, %v2167, 0.0
      %v2215 = vadd.f32 %v2213, %v2214
      %v2216 = vsel %vm1794, %v2168, 0.0
      %v2217 = vadd.f32 %v2215, %v2216
      %v2218 = vsel %vm1794, %v2169, 0.0
      %v2219 = vadd.f32 %v2217, %v2218
      %v2220 = vsel %vm1794, %v2170, 0.0
      %v2221 = vadd.f32 %v2219, %v2220
      %v2222 = vsel %vm1794, %v2171, 0.0
      %v2223 = vadd.f32 %v2221, %v2222
      %v2224 = vsel %vm1794, %v2172, 0.0
      %v2225 = vadd.f32 %v2223, %v2224
      %v2226 = vsel %vm1794, %v2173, 0.0
      %v2227 = vadd.f32 %v2225, %v2226
      %v2228 = vsel %vm1794, %v2174, 0.0
      %v2229 = vadd.f32 %v2227, %v2228
      %v2230 = vsel %vm1794, %v2175, 0.0
      %v2231 = vadd.f32 %v2229, %v2230
      %v2232 = vsel %vm1794, %v2176, 0.0
      %v2233 = vadd.f32 %v2231, %v2232
      %v2234 = vsel %vm1794, %v2177, 0.0
      %v2235 = vadd.f32 %v2233, %v2234
      %v2236 = vsel %vm1794, %v2178, 0.0
      %v2237 = vadd.f32 %v2235, %v2236
      %v2238 = vsel %vm1794, %v2179, 0.0
      %v2239 = vadd.f32 %v2237, %v2238
      %v2240 = vsel %vm1794, %v2180, 0.0
      %v2241 = vadd.f32 %v2239, %v2240
      %v2242 = vsel %vm1794, %v2181, 0.0
      %v2243 = vadd.f32 %v2241, %v2242
      %v2244 = vsel %vm1794, %v2182, 0.0
      %v2245 = vadd.f32 %v2243, %v2244
      %v2246 = vrot.slane %v2245, 4
      %v2247 = vadd.f32 %v2245, %v2246
      %v2248 = vrot.slane %v2247, 2
      %v2249 = vadd.f32 %v2247, %v2248
      %v2250 = vrot.slane %v2249, 1
      %v2251 = vadd.f32 %v2249, %v2250
      %vm2252 = vcmask 1040384
      %v2253 = vsel %vm2252, %v2150, %v2251
      %vm2254 = vcmask 254976
      %2255 = vst.msk [vmem:[%s241] sm:$0x3] %vm2254, %v2253
      %s2256 = smul.u32 16, %s21
      %p2257 = scmp.lt.s32.totalorder %s20, 1
      %s2258 = scalar_select %p2257, %s20, 1
      %p2259 = scmp.lt.s32.totalorder %s2256, 15
      %s2260 = scalar_select %p2259, %s2256, 15
      %s2261 = smul.addr %s2260, 2
      %s2262 = smul.addr %s2258, 32
      %s2263 = sadd.s32 %s2261, %s2262
      %s2264 = smul.addr %s2263, 8
      %s2265 = scalar_lea.vmem %s3, %s2264
      %p2266 = scmp.lt.s32.totalorder %s20, 1
      %s2267 = scalar_select %p2266, %s20, 1
      %p2268 = scmp.lt.s32.totalorder %s21, 0
      %s2269 = scalar_select %p2268, %s21, 0
      %s2270 = sadd.s32 %s2269, %s2267
      %s2271 = smul.addr %s2270, 2
      %s2272 = scalar_lea.vmem %s4, %s2271
      // Predicated region
      $region33: #{conv_bn_block_forward.2} parent=31 // pred_check
        %p2273 = pneg %p116
      $region34: #{conv_bn_block_forward.2} parent=31 // pred_check_branch
        %2275 = sbr.rel (%p2273) target = $region36
      $region35: #{conv_bn_block_forward.2} parent=31 // pred_region
        %s2276 = smul.u32 16, %s21
      $region36: #{conv_bn_block_forward.2} parent=31 // pred_fallthru
        _
      // Predicated region
      $region37: #{conv_bn_block_forward.2} parent=31 // pred_check
        %p2277 = pneg %p144
      $region38: #{conv_bn_block_forward.2} parent=31 // pred_check_branch
        %2279 = sbr.rel (%p2277) target = $region40
      $region39: #{conv_bn_block_forward.2} parent=31 // pred_region
        _
      $region40: #{conv_bn_block_forward.2} parent=31 // pred_fallthru
        _
    $region32: #{conv_bn_block_forward.2} parent=5 // pred_fallthru
      _
    %p2280 = scmp.le.s32.totalorder 2, %s11
    // Predicated region
    $region41: #{conv_bn_block_forward.2} parent=5 // pred_check
      %p2281 = pneg %p2280
    $region42: #{conv_bn_block_forward.2} parent=5 // pred_check_branch
      %2283 = sbr.rel (%p2281) target = $region44
    $region43: #{conv_bn_block_forward.2} parent=5 // pred_region
      %s2284 = ssub.s32 %s11, 2
      // Predicated region
      $region45: #{conv_bn_block_forward.2} parent=43 // pred_check
        %p2285 = pneg %p122
      $region46: #{conv_bn_block_forward.2} parent=43 // pred_check_branch
        %2287 = sbr.rel (%p2285) target = $region48
      $region47: #{conv_bn_block_forward.2} parent=43 // pred_region
        %s2288 = smul.u32 16, %s23
        %p2289 = scmp.lt.s32.totalorder %s22, 1
        %s2290 = scalar_select %p2289, %s22, 1
        %p2291 = scmp.lt.s32.totalorder %s2288, 15
        %s2292 = scalar_select %p2291, %s2288, 15
        %s2293 = smul.addr %s2292, 2
        %s2294 = smul.addr %s2290, 32
        %s2295 = sadd.s32 %s2293, %s2294
        %s2296 = smul.addr %s2295, 8
        %s2297 = scalar_lea.vmem %s3, %s2296
      $region48: #{conv_bn_block_forward.2} parent=43 // pred_fallthru
        _
      // Predicated region
      $region49: #{conv_bn_block_forward.2} parent=43 // pred_check
        %p2298 = pneg %p150
      $region50: #{conv_bn_block_forward.2} parent=43 // pred_check_branch
        %2300 = sbr.rel (%p2298) target = $region52
      $region51: #{conv_bn_block_forward.2} parent=43 // pred_region
        %p2301 = scmp.lt.s32.totalorder %s22, 1
        %s2302 = scalar_select %p2301, %s22, 1
        %p2303 = scmp.lt.s32.totalorder %s23, 0
        %s2304 = scalar_select %p2303, %s23, 0
        %s2305 = sadd.s32 %s2304, %s2302
        %s2306 = smul.addr %s2305, 2
        %s2307 = scalar_lea.vmem %s4, %s2306
      $region52: #{conv_bn_block_forward.2} parent=43 // pred_fallthru
        _
    $region44: #{conv_bn_block_forward.2} parent=5 // pred_fallthru
      _
  $region6: #{conv_bn_block_forward.2} parent=0 // loop_footer
    %s15 = sadd.s32 1, %s11
  $region7: #{conv_bn_block_forward.2} parent=0 // loop_footer_branch
    %10 = sbr.rel target = $region3
  $region8: #{conv_bn_block_forward.2} parent=0 // loop_exit
    _

</llo_original>
